<compile_context>
chip_gen: v5e
topology: v5e:2x2
jax: 0.10.0
libtpu: 0.0.40
codegen_flags: <defaults>
</compile_context>

<pallas_src>
import functools

import jax
import jax.numpy as jnp
from jax.experimental import pallas as pl
from jax.experimental.pallas import tpu as pltpu


def _round_up(x, m):
    return (x + m - 1) // m * m


def _lane_multiple():
    # v6e / v7x have 2x256x256 MXUs -> pad N dims to 256; v5e and older use 128.
    try:
        kind = jax.devices()[0].device_kind.lower()
    except Exception:
        return 128
    if any(t in kind for t in ("v2", "v3", "v4", "v5")):
        return 128
    return 256


_N_MULTIPLE = _lane_multiple()


# ---------------------------------------------------------------------------
# Fused Pallas kernel
# ---------------------------------------------------------------------------

def _vae_fused_kernel(x_ref, eps_ref,
                      w1_ref, b1_ref,
                      wst_ref, bst_ref,
                      w3_ref, b3_ref,
                      w4_ref, b4_ref,
                      stats_ref, recon_ref, *, lp):
    """One batch tile of the full VAE forward pass.

    x:     [TB, Dp]   bf16
    eps:   [TB, Lp]   f32
    w1:    [Dp, Hp]   bf16   b1:  [1, Hp]    f32
    wst:   [Hp, 2Lp]  bf16   bst: [1, 2Lp]   f32   (wmu || wlv, bmu || blv)
    w3:    [Lp, Hp]   bf16   b3:  [1, Hp]    f32
    w4:    [Hp, Dp]   bf16   b4:  [1, Dp]    f32
    stats: [TB, 3Lp]  f32    (mu | logvar | z, lane-dense packed)
    recon: [TB, Dp]   bf16
    """
    # ----- encoder hidden layer ---------------------------------------------
    h = jnp.dot(x_ref[...], w1_ref[...],
                preferred_element_type=jnp.float32) + b1_ref[...]
    h = jnp.maximum(h, 0.0)                                   # ReLU

    # ----- mu || logvar in a single MXU pass ---------------------------------
    st = jnp.dot(h.astype(jnp.bfloat16), wst_ref[...],
                 preferred_element_type=jnp.float32) + bst_ref[...]
    mu = st[:, :lp]
    logvar = st[:, lp:]

    # ----- reparameterize: z = mu + eps * exp(0.5 * logvar) ------------------
    std = jnp.exp(0.5 * logvar)                               # EUP
    z = mu + eps_ref[...] * std

    # packed lane-dense stats output (aligned 128-wide slices)
    stats_ref[:, 0 * lp:1 * lp] = mu
    stats_ref[:, 1 * lp:2 * lp] = logvar
    stats_ref[:, 2 * lp:3 * lp] = z

    # ----- decoder ------------------------------------------------------------
    h2 = jnp.dot(z.astype(jnp.bfloat16), w3_ref[...],
                 preferred_element_type=jnp.float32) + b3_ref[...]
    h2 = jnp.maximum(h2, 0.0)                                 # ReLU
    y = jnp.dot(h2.astype(jnp.bfloat16), w4_ref[...],
                preferred_element_type=jnp.float32) + b4_ref[...]

    # sigmoid: exp and reciprocal both land on the EUP slot (hidden under MXU work at real sizes)
    recon_ref[...] = pl.reciprocal(1.0 + jnp.exp(-y), approx=True).astype(recon_ref.dtype)


# ---------------------------------------------------------------------------
# Wrapper: pad/pack params, call the kernel, slice logical outputs
# ---------------------------------------------------------------------------

def _pad2(a, rows, cols):
    return jnp.pad(a, ((0, rows - a.shape[0]), (0, cols - a.shape[1])))


@functools.partial(jax.jit, static_argnames=("tb", "n_mult"))
def vae_forward(x_nchw, params, eps, *, tb=256, n_mult=_N_MULTIPLE):
    """Full VAE forward. Returns (reconstruction_nchw [bf16], mu, logvar, z)."""
    B, C, H, W = x_nchw.shape
    D = C * H * W
    Hd = params["w1"].shape[1]
    L = params["wmu"].shape[1]

    # padded (lane / sublane friendly) sizes; N dims padded to the MXU width
    Dp = _round_up(D, n_mult)
    Hp = _round_up(Hd, n_mult)
    Lp = _round_up(L, n_mult)

    # batch tile: multiple of 16 (bf16 sublane packing), clamped to the padded batch.
    # For real workloads pick B so that nb >= 2 (pipelining / megacore on v7x) and nb even.
    tb = min(tb, _round_up(B, 16))
    Bp = _round_up(B, tb)
    nb = Bp // tb

    bf16 = jnp.bfloat16
    f32 = jnp.float32

    # ---- pack + pad parameters (weights bf16, biases f32) --------------------
    w1 = _pad2(params["w1"], Dp, Hp).astype(bf16)
    b1 = _pad2(params["b1"], 1, Hp).astype(f32)
    wst = jnp.concatenate(
        [_pad2(params["wmu"], Hp, Lp), _pad2(params["wlv"], Hp, Lp)], axis=1
    ).astype(bf16)
    bst = jnp.concatenate(
        [_pad2(params["bmu"], 1, Lp), _pad2(params["blv"], 1, Lp)], axis=1
    ).astype(f32)
    w3 = _pad2(params["w3"], Lp, Hp).astype(bf16)
    b3 = _pad2(params["b3"], 1, Hp).astype(f32)
    w4 = _pad2(params["w4"], Hp, Dp).astype(bf16)
    b4 = _pad2(params["b4"], 1, Dp).astype(f32)

    # ---- pad activations (cast to bf16 BEFORE padding: no f32 [Bp, Dp] slab) --
    x_pad = _pad2(x_nchw.reshape(B, D).astype(bf16), Bp, Dp)
    eps_pad = _pad2(eps.astype(f32), Bp, Lp)

    # ---- explicit scoped-VMEM budget -----------------------------------------
    weight_bytes = 2 * (Dp * Hp + Hp * 2 * Lp + Lp * Hp + Hp * Dp)      # bf16, single-buffered
    bias_bytes = 4 * (2 * Hp + 2 * Lp + Dp)
    in_tiles = tb * Dp * 2 + tb * Lp * 4                                 # x bf16, eps f32
    out_tiles = tb * 3 * Lp * 4 + tb * Dp * 2                            # stats f32, recon bf16
    interm = 4 * tb * (2 * Hp + 3 * Lp + 2 * Lp + Dp)                    # h, h2, st, z/std, y
    vmem_bytes = weight_bytes + bias_bytes + 2 * (in_tiles + out_tiles) + interm
    vmem_limit = min(max(int(vmem_bytes * 1.3), 16 * 1024 * 1024), 64 * 1024 * 1024)

    kernel = functools.partial(_vae_fused_kernel, lp=Lp)
    whole = lambda i: (0, 0)          # weights/biases: resident, constant block index
    tile = lambda i: (i, 0)           # batch-tiled arrays
    resident = pl.Buffered(1)         # grid-invariant -> no double buffering

    stats, recon_pad = pl.pallas_call(
        kernel,
        out_shape=(
            jax.ShapeDtypeStruct((Bp, 3 * Lp), jnp.float32),   # mu | logvar | z
            jax.ShapeDtypeStruct((Bp, Dp), jnp.bfloat16),      # reconstruction (flat, bf16)
        ),
        grid=(nb,),
        in_specs=[
            pl.BlockSpec((tb, Dp), tile),                               # x
            pl.BlockSpec((tb, Lp), tile),                               # eps
            pl.BlockSpec((Dp, Hp), whole, pipeline_mode=resident),      # w1
            pl.BlockSpec((1, Hp), whole, pipeline_mode=resident),       # b1
            pl.BlockSpec((Hp, 2 * Lp), whole, pipeline_mode=resident),  # wmu||wlv
            pl.BlockSpec((1, 2 * Lp), whole, pipeline_mode=resident),   # bmu||blv
            pl.BlockSpec((Lp, Hp), whole, pipeline_mode=resident),      # w3
            pl.BlockSpec((1, Hp), whole, pipeline_mode=resident),       # b3
            pl.BlockSpec((Hp, Dp), whole, pipeline_mode=resident),      # w4
            pl.BlockSpec((1, Dp), whole, pipeline_mode=resident),       # b4
        ],
        out_specs=(
            pl.BlockSpec((tb, 3 * Lp), tile),
            pl.BlockSpec((tb, Dp), tile),
        ),
        compiler_params=pltpu.CompilerParams(
            dimension_semantics=("parallel",),    # batch axis shards across TCs on v7x
            vmem_limit_bytes=vmem_limit,
        ),
    )(x_pad, eps_pad, w1, b1, wst, bst, w3, b3, w4, b4)

    # ---- slice back to logical shapes ----------------------------------------
    mu = stats[:B, 0 * Lp:0 * Lp + L]
    logvar = stats[:B, 1 * Lp:1 * Lp + L]
    z = stats[:B, 2 * Lp:2 * Lp + L]
    recon = recon_pad[:B, :D].reshape(B, C, H, W)   # bf16; upcast outside only if loss needs f32
    return recon, mu, logvar, z


# ---------------------------------------------------------------------------
# Deterministic parameter construction (logical, unpadded shapes)
# ---------------------------------------------------------------------------

def init_params(key, in_dim, hidden_dim, latent_dim):
    ks = jax.random.split(key, 6)
    scale_in = 1.0 / jnp.sqrt(in_dim)
    scale_h = 1.0 / jnp.sqrt(hidden_dim)
    scale_l = 1.0 / jnp.sqrt(latent_dim)
    return {
        "w1": jax.random.normal(ks[0], (in_dim, hidden_dim), jnp.float32) * scale_in,
        "b1": jnp.zeros((1, hidden_dim), jnp.float32),
        "wmu": jax.random.normal(ks[1], (hidden_dim, latent_dim), jnp.float32) * scale_h,
        "bmu": jnp.zeros((1, latent_dim), jnp.float32),
        "wlv": jax.random.normal(ks[2], (hidden_dim, latent_dim), jnp.float32) * scale_h,
        "blv": jnp.zeros((1, latent_dim), jnp.float32),
        "w3": jax.random.normal(ks[3], (latent_dim, hidden_dim), jnp.float32) * scale_l,
        "b3": jnp.zeros((1, hidden_dim), jnp.float32),
        "w4": jax.random.normal(ks[4], (hidden_dim, in_dim), jnp.float32) * scale_h,
        "b4": jnp.zeros((1, in_dim), jnp.float32),
    }


# ---------------------------------------------------------------------------
# Pure-JAX reference (same bf16-in / f32-accumulate numerics as the kernel)
# ---------------------------------------------------------------------------

def reference_forward(x_nchw, params, eps):
    B, C, H, W = x_nchw.shape
    D = C * H * W
    bf = lambda a: a.astype(jnp.bfloat16)
    x_flat = x_nchw.reshape(B, D).astype(jnp.float32)

    h = jnp.dot(bf(x_flat), bf(params["w1"]),
                preferred_element_type=jnp.float32) + params["b1"]
    h = jnp.maximum(h, 0.0)
    mu = jnp.dot(bf(h), bf(params["wmu"]),
                 preferred_element_type=jnp.float32) + params["bmu"]
    lv = jnp.dot(bf(h), bf(params["wlv"]),
                 preferred_element_type=jnp.float32) + params["blv"]
    z = mu + eps * jnp.exp(0.5 * lv)
    h2 = jnp.dot(bf(z), bf(params["w3"]),
                 preferred_element_type=jnp.float32) + params["b3"]
    h2 = jnp.maximum(h2, 0.0)
    y = jnp.dot(bf(h2), bf(params["w4"]),
                preferred_element_type=jnp.float32) + params["b4"]
    recon = jax.nn.sigmoid(y).reshape(B, C, H, W)
    return recon, mu, lv, z


# ---------------------------------------------------------------------------
# Main
# ---------------------------------------------------------------------------

if __name__ == "__main__":
    # Small shapes consistent with the module's conv-style NCHW input.
    # NOTE: B=2 keeps MXU utilization tiny; real workloads should batch >=256 per call
    # (and keep nb even so both v7x TensorCores get equal work).
    B, C, H, W = 2, 4, 16, 16
    D = C * H * W          # 1024 flattened features
    HIDDEN = 32
    LATENT = 16

    root = jax.random.PRNGKey(0)
    k_x, k_eps, k_p = jax.random.split(root, 3)

    x = jax.random.uniform(k_x, (B, C, H, W), jnp.float32)
    # torch.randn_like(std) equivalent — deterministic standard-normal noise.
    eps = jax.random.normal(k_eps, (B, LATENT), jnp.float32)

    params = init_params(k_p, D, HIDDEN, LATENT)

    recon, mu, logvar, z = vae_forward(x, params, eps)
    jax.block_until_ready((recon, mu, logvar, z))

    recon_r, mu_r, lv_r, z_r = reference_forward(x, params, eps)

    assert recon.shape == (B, C, H, W)
    assert mu.shape == (B, LATENT) and logvar.shape == (B, LATENT)
    assert jnp.allclose(mu, mu_r, atol=1e-2, rtol=1e-2)
    assert jnp.allclose(logvar, lv_r, atol=1e-2, rtol=1e-2)
    assert jnp.allclose(z, z_r, atol=1e-2, rtol=1e-2)
    assert jnp.allclose(recon.astype(jnp.float32), recon_r, atol=2e-2, rtol=2e-2)

    print("KERNEL_OK")
</pallas_src>

<mosaic_0001>
module attributes {stable_mosaic.version = 11 : i64} {
  func.func @_vae_fused_kernel(%arg0: i32, %arg1: memref<16x1024xbf16, #tpu.memory_space<vmem>>, %arg2: memref<16x256xf32, #tpu.memory_space<vmem>>, %arg3: memref<1024x256xbf16, #tpu.memory_space<vmem>>, %arg4: memref<1x256xf32, #tpu.memory_space<vmem>>, %arg5: memref<256x512xbf16, #tpu.memory_space<vmem>>, %arg6: memref<1x512xf32, #tpu.memory_space<vmem>>, %arg7: memref<256x256xbf16, #tpu.memory_space<vmem>>, %arg8: memref<1x256xf32, #tpu.memory_space<vmem>>, %arg9: memref<256x1024xbf16, #tpu.memory_space<vmem>>, %arg10: memref<1x1024xf32, #tpu.memory_space<vmem>>, %arg11: memref<16x768xf32, #tpu.memory_space<vmem>>, %arg12: memref<16x1024xbf16, #tpu.memory_space<vmem>>) attributes {dimension_semantics = [#tpu.dimension_semantics<parallel>], iteration_bounds = array<i64: 1>, scalar_prefetch = 0 : i64, scratch_operands = 0 : i64, tpu.core_type = #tpu.core_type<tc>, window_params = [{transform_indices = @transform_0, window_bounds = array<i64: 16, 1024>}, {transform_indices = @transform_1, window_bounds = array<i64: 16, 256>}, {pipeline_mode = #tpu.pipeline_mode<synchronous>, transform_indices = @transform_2, window_bounds = array<i64: 1024, 256>}, {pipeline_mode = #tpu.pipeline_mode<synchronous>, transform_indices = @transform_3, window_bounds = array<i64: 1, 256>}, {pipeline_mode = #tpu.pipeline_mode<synchronous>, transform_indices = @transform_4, window_bounds = array<i64: 256, 512>}, {pipeline_mode = #tpu.pipeline_mode<synchronous>, transform_indices = @transform_5, window_bounds = array<i64: 1, 512>}, {pipeline_mode = #tpu.pipeline_mode<synchronous>, transform_indices = @transform_6, window_bounds = array<i64: 256, 256>}, {pipeline_mode = #tpu.pipeline_mode<synchronous>, transform_indices = @transform_7, window_bounds = array<i64: 1, 256>}, {pipeline_mode = #tpu.pipeline_mode<synchronous>, transform_indices = @transform_8, window_bounds = array<i64: 256, 1024>}, {pipeline_mode = #tpu.pipeline_mode<synchronous>, transform_indices = @transform_9, window_bounds = array<i64: 1, 1024>}, {transform_indices = @transform_10, window_bounds = array<i64: 16, 768>}, {transform_indices = @transform_11, window_bounds = array<i64: 16, 1024>}]} {
    %c0 = arith.constant 0 : index
    %c0_0 = arith.constant 0 : index
    %0 = vector.load %arg1[%c0, %c0_0] : memref<16x1024xbf16, #tpu.memory_space<vmem>>, vector<16x1024xbf16>
    %c0_1 = arith.constant 0 : index
    %c0_2 = arith.constant 0 : index
    %1 = vector.load %arg3[%c0_1, %c0_2] : memref<1024x256xbf16, #tpu.memory_space<vmem>>, vector<1024x256xbf16>
    %cst = arith.constant dense<0.000000e+00> : vector<16x256xf32>
    %2 = tpu.matmul %0, %1, %cst {dimension_numbers = #tpu.dot_dimension_numbers<[1], [0], [0], [1], [0, 0, 1, 1], [], []>} : vector<16x1024xbf16>, vector<1024x256xbf16>, vector<16x256xf32> -> vector<16x256xf32>
    %c0_3 = arith.constant 0 : index
    %c0_4 = arith.constant 0 : index
    %3 = vector.load %arg4[%c0_3, %c0_4] : memref<1x256xf32, #tpu.memory_space<vmem>>, vector<1x256xf32>
    %4 = vector.broadcast %3 : vector<1x256xf32> to vector<16x256xf32>
    %5 = arith.addf %2, %4 : vector<16x256xf32>
    %cst_5 = arith.constant 0.000000e+00 : f32
    %6 = vector.broadcast %cst_5 : f32 to vector<16x256xf32>
    %7 = arith.maximumf %5, %6 : vector<16x256xf32>
    %8 = arith.truncf %7 : vector<16x256xf32> to vector<16x256xbf16>
    %c0_6 = arith.constant 0 : index
    %c0_7 = arith.constant 0 : index
    %9 = vector.load %arg5[%c0_6, %c0_7] : memref<256x512xbf16, #tpu.memory_space<vmem>>, vector<256x512xbf16>
    %cst_8 = arith.constant dense<0.000000e+00> : vector<16x512xf32>
    %10 = tpu.matmul %8, %9, %cst_8 {dimension_numbers = #tpu.dot_dimension_numbers<[1], [0], [0], [1], [0, 0, 1, 1], [], []>} : vector<16x256xbf16>, vector<256x512xbf16>, vector<16x512xf32> -> vector<16x512xf32>
    %c0_9 = arith.constant 0 : index
    %c0_10 = arith.constant 0 : index
    %11 = vector.load %arg6[%c0_9, %c0_10] : memref<1x512xf32, #tpu.memory_space<vmem>>, vector<1x512xf32>
    %12 = vector.broadcast %11 : vector<1x512xf32> to vector<16x512xf32>
    %13 = arith.addf %10, %12 : vector<16x512xf32>
    %14 = vector.extract_strided_slice %13 {offsets = [0, 0], sizes = [16, 256], strides = [1, 1]} : vector<16x512xf32> to vector<16x256xf32>
    %15 = vector.extract_strided_slice %13 {offsets = [0, 256], sizes = [16, 256], strides = [1, 1]} : vector<16x512xf32> to vector<16x256xf32>
    %cst_11 = arith.constant 5.000000e-01 : f32
    %16 = vector.broadcast %cst_11 : f32 to vector<16x256xf32>
    %17 = arith.mulf %16, %15 : vector<16x256xf32>
    %18 = math.exp %17 : vector<16x256xf32>
    %c0_12 = arith.constant 0 : index
    %c0_13 = arith.constant 0 : index
    %19 = vector.load %arg2[%c0_12, %c0_13] : memref<16x256xf32, #tpu.memory_space<vmem>>, vector<16x256xf32>
    %20 = arith.mulf %19, %18 : vector<16x256xf32>
    %21 = arith.addf %14, %20 : vector<16x256xf32>
    %c0_14 = arith.constant 0 : index
    %c0_15 = arith.constant 0 : index
    %22 = vector.load %arg11[%c0_14, %c0_15] : memref<16x768xf32, #tpu.memory_space<vmem>>, vector<16x256xf32>
    tpu.vector_store %arg11[%c0_14, %c0_15], %14 {strides = array<i32>} : memref<16x768xf32, #tpu.memory_space<vmem>>, vector<16x256xf32>,
    %c0_16 = arith.constant 0 : index
    %c256 = arith.constant 256 : index
    %23 = vector.load %arg11[%c0_16, %c256] : memref<16x768xf32, #tpu.memory_space<vmem>>, vector<16x256xf32>
    tpu.vector_store %arg11[%c0_16, %c256], %15 {strides = array<i32>} : memref<16x768xf32, #tpu.memory_space<vmem>>, vector<16x256xf32>,
    %c0_17 = arith.constant 0 : index
    %c512 = arith.constant 512 : index
    %24 = vector.load %arg11[%c0_17, %c512] : memref<16x768xf32, #tpu.memory_space<vmem>>, vector<16x256xf32>
    tpu.vector_store %arg11[%c0_17, %c512], %21 {strides = array<i32>} : memref<16x768xf32, #tpu.memory_space<vmem>>, vector<16x256xf32>,
    %25 = arith.truncf %21 : vector<16x256xf32> to vector<16x256xbf16>
    %c0_18 = arith.constant 0 : index
    %c0_19 = arith.constant 0 : index
    %26 = vector.load %arg7[%c0_18, %c0_19] : memref<256x256xbf16, #tpu.memory_space<vmem>>, vector<256x256xbf16>
    %cst_20 = arith.constant dense<0.000000e+00> : vector<16x256xf32>
    %27 = tpu.matmul %25, %26, %cst_20 {dimension_numbers = #tpu.dot_dimension_numbers<[1], [0], [0], [1], [0, 0, 1, 1], [], []>} : vector<16x256xbf16>, vector<256x256xbf16>, vector<16x256xf32> -> vector<16x256xf32>
    %c0_21 = arith.constant 0 : index
    %c0_22 = arith.constant 0 : index
    %28 = vector.load %arg8[%c0_21, %c0_22] : memref<1x256xf32, #tpu.memory_space<vmem>>, vector<1x256xf32>
    %29 = vector.broadcast %28 : vector<1x256xf32> to vector<16x256xf32>
    %30 = arith.addf %27, %29 : vector<16x256xf32>
    %cst_23 = arith.constant 0.000000e+00 : f32
    %31 = vector.broadcast %cst_23 : f32 to vector<16x256xf32>
    %32 = arith.maximumf %30, %31 : vector<16x256xf32>
    %33 = arith.truncf %32 : vector<16x256xf32> to vector<16x256xbf16>
    %c0_24 = arith.constant 0 : index
    %c0_25 = arith.constant 0 : index
    %34 = vector.load %arg9[%c0_24, %c0_25] : memref<256x1024xbf16, #tpu.memory_space<vmem>>, vector<256x1024xbf16>
    %cst_26 = arith.constant dense<0.000000e+00> : vector<16x1024xf32>
    %35 = tpu.matmul %33, %34, %cst_26 {dimension_numbers = #tpu.dot_dimension_numbers<[1], [0], [0], [1], [0, 0, 1, 1], [], []>} : vector<16x256xbf16>, vector<256x1024xbf16>, vector<16x1024xf32> -> vector<16x1024xf32>
    %c0_27 = arith.constant 0 : index
    %c0_28 = arith.constant 0 : index
    %36 = vector.load %arg10[%c0_27, %c0_28] : memref<1x1024xf32, #tpu.memory_space<vmem>>, vector<1x1024xf32>
    %37 = vector.broadcast %36 : vector<1x1024xf32> to vector<16x1024xf32>
    %38 = arith.addf %35, %37 : vector<16x1024xf32>
    %cst_29 = arith.constant 0.000000e+00 : f32
    %39 = vector.broadcast %cst_29 : f32 to vector<16x1024xf32>
    %40 = arith.subf %39, %38 : vector<16x1024xf32>
    %41 = math.exp %40 : vector<16x1024xf32>
    %cst_30 = arith.constant 1.000000e+00 : f32
    %42 = vector.broadcast %cst_30 : f32 to vector<16x1024xf32>
    %43 = arith.addf %42, %41 : vector<16x1024xf32>
    %44 = tpu.reciprocal %43 {approx = true} : vector<16x1024xf32> -> vector<16x1024xf32>
    %45 = arith.truncf %44 : vector<16x1024xf32> to vector<16x1024xbf16>
    %c0_31 = arith.constant 0 : index
    %c0_32 = arith.constant 0 : index
    %46 = vector.load %arg12[%c0_31, %c0_32] : memref<16x1024xbf16, #tpu.memory_space<vmem>>, vector<16x1024xbf16>
    tpu.vector_store %arg12[%c0_31, %c0_32], %45 {strides = array<i32>} : memref<16x1024xbf16, #tpu.memory_space<vmem>>, vector<16x1024xbf16>,
    return
  }
  func.func @transform_0(%arg0: i32) -> (i32, i32) {
    %c0_i32 = arith.constant 0 : i32
    %c0_i32_0 = arith.constant 0 : i32
    return %arg0, %c0_i32 : i32, i32
  }
  func.func @transform_1(%arg0: i32) -> (i32, i32) {
    %c0_i32 = arith.constant 0 : i32
    %c0_i32_0 = arith.constant 0 : i32
    return %arg0, %c0_i32 : i32, i32
  }
  func.func @transform_2(%arg0: i32) -> (i32, i32) {
    %c0_i32 = arith.constant 0 : i32
    %c0_i32_0 = arith.constant 0 : i32
    %c0_i32_1 = arith.constant 0 : i32
    return %c0_i32, %c0_i32_0 : i32, i32
  }
  func.func @transform_3(%arg0: i32) -> (i32, i32) {
    %c0_i32 = arith.constant 0 : i32
    %c0_i32_0 = arith.constant 0 : i32
    %c0_i32_1 = arith.constant 0 : i32
    return %c0_i32, %c0_i32_0 : i32, i32
  }
  func.func @transform_4(%arg0: i32) -> (i32, i32) {
    %c0_i32 = arith.constant 0 : i32
    %c0_i32_0 = arith.constant 0 : i32
    %c0_i32_1 = arith.constant 0 : i32
    return %c0_i32, %c0_i32_0 : i32, i32
  }
  func.func @transform_5(%arg0: i32) -> (i32, i32) {
    %c0_i32 = arith.constant 0 : i32
    %c0_i32_0 = arith.constant 0 : i32
    %c0_i32_1 = arith.constant 0 : i32
    return %c0_i32, %c0_i32_0 : i32, i32
  }
  func.func @transform_6(%arg0: i32) -> (i32, i32) {
    %c0_i32 = arith.constant 0 : i32
    %c0_i32_0 = arith.constant 0 : i32
    %c0_i32_1 = arith.constant 0 : i32
    return %c0_i32, %c0_i32_0 : i32, i32
  }
  func.func @transform_7(%arg0: i32) -> (i32, i32) {
    %c0_i32 = arith.constant 0 : i32
    %c0_i32_0 = arith.constant 0 : i32
    %c0_i32_1 = arith.constant 0 : i32
    return %c0_i32, %c0_i32_0 : i32, i32
  }
  func.func @transform_8(%arg0: i32) -> (i32, i32) {
    %c0_i32 = arith.constant 0 : i32
    %c0_i32_0 = arith.constant 0 : i32
    %c0_i32_1 = arith.constant 0 : i32
    return %c0_i32, %c0_i32_0 : i32, i32
  }
  func.func @transform_9(%arg0: i32) -> (i32, i32) {
    %c0_i32 = arith.constant 0 : i32
    %c0_i32_0 = arith.constant 0 : i32
    %c0_i32_1 = arith.constant 0 : i32
    return %c0_i32, %c0_i32_0 : i32, i32
  }
  func.func @transform_10(%arg0: i32) -> (i32, i32) {
    %c0_i32 = arith.constant 0 : i32
    %c0_i32_0 = arith.constant 0 : i32
    return %arg0, %c0_i32 : i32, i32
  }
  func.func @transform_11(%arg0: i32) -> (i32, i32) {
    %c0_i32 = arith.constant 0 : i32
    %c0_i32_0 = arith.constant 0 : i32
    return %arg0, %c0_i32 : i32, i32
  }
}

</mosaic_0001>

<llo_original>
// kernel: vae_forward.1
$region0: #{vae_forward.1}
  #allocation0 [shape = 'u32[]', space=smem, size = 0x4, offset = 0x4, fixed_abs, tag = 'smem constant byte address 0x4 - core index']
  #allocation1 [shape = 'u32[72,128]{1,0:T(1,128)}', space=vmem, size = 0x9000, scoped, tag = 'internal scratch']
  %s0 = inlined_call_operand.vmem [shape: bf16[16,1024], index: 0, kind: input, shape index: {}]
  %s1 = inlined_call_operand.vmem [shape: f32[16,256], index: 1, kind: input, shape index: {}]
  %s2 = inlined_call_operand.vmem [shape: bf16[1024,256], index: 2, kind: input, shape index: {}]
  %s3 = inlined_call_operand.vmem [shape: f32[1,256], index: 3, kind: input, shape index: {}]
  %s4 = inlined_call_operand.vmem [shape: bf16[256,512], index: 4, kind: input, shape index: {}]
  %s5 = inlined_call_operand.vmem [shape: f32[1,512], index: 5, kind: input, shape index: {}]
  %s6 = inlined_call_operand.vmem [shape: bf16[256,256], index: 6, kind: input, shape index: {}]
  %s7 = inlined_call_operand.vmem [shape: f32[1,256], index: 7, kind: input, shape index: {}]
  %s8 = inlined_call_operand.vmem [shape: bf16[256,1024], index: 8, kind: input, shape index: {}]
  %s9 = inlined_call_operand.vmem [shape: f32[1,1024], index: 9, kind: input, shape index: {}]
  %s10 = inlined_call_operand.vmem [shape: f32[16,768], index: 10, kind: output, shape index: {0}]
  %s11 = inlined_call_operand.vmem [shape: bf16[16,1024], index: 11, kind: output, shape index: {1}]
  %12 = xla_tuple %s10, %s11
  %s13 = sld [smem:[#allocation0]]
  $region58: #{vae_forward.1} parent=0
    _
  %s15 = ssub.s32 1, %s13
  %s16 = scalar_select 0, %s15, %s13
  // Predicated region
  $region2: #{vae_forward.1} parent=0 // pred_check
    _
  $region3: #{vae_forward.1} parent=0 // pred_check_branch
    %18 = sbr.rel (0) target = $region5
  $region4: #{vae_forward.1} parent=0 // pred_region
    _
  $region5: #{vae_forward.1} parent=0 // pred_fallthru
    _
  // Predicated region
  $region6: #{vae_forward.1} parent=0 // pred_check
    _
  $region7: #{vae_forward.1} parent=0 // pred_check_branch
    %20 = sbr.rel (0) target = $region9
  $region8: #{vae_forward.1} parent=0 // pred_region
    _
  $region9: #{vae_forward.1} parent=0 // pred_fallthru
    _
  // Predicated region
  $region10: #{vae_forward.1} parent=0 // pred_check
    _
  $region11: #{vae_forward.1} parent=0 // pred_check_branch
    %22 = sbr.rel (0) target = $region13
  $region12: #{vae_forward.1} parent=0 // pred_region
    _
  $region13: #{vae_forward.1} parent=0 // pred_fallthru
    _
  // Predicated region
  $region14: #{vae_forward.1} parent=0 // pred_check
    _
  $region15: #{vae_forward.1} parent=0 // pred_check_branch
    %24 = sbr.rel (0) target = $region17
  $region16: #{vae_forward.1} parent=0 // pred_region
    _
  $region17: #{vae_forward.1} parent=0 // pred_fallthru
    _
  // Predicated region
  $region18: #{vae_forward.1} parent=0 // pred_check
    _
  $region19: #{vae_forward.1} parent=0 // pred_check_branch
    %26 = sbr.rel (0) target = $region21
  $region20: #{vae_forward.1} parent=0 // pred_region
    _
  $region21: #{vae_forward.1} parent=0 // pred_fallthru
    _
  // Predicated region
  $region22: #{vae_forward.1} parent=0 // pred_check
    _
  $region23: #{vae_forward.1} parent=0 // pred_check_branch
    %28 = sbr.rel (0) target = $region25
  $region24: #{vae_forward.1} parent=0 // pred_region
    _
  $region25: #{vae_forward.1} parent=0 // pred_fallthru
    _
  // Predicated region
  $region26: #{vae_forward.1} parent=0 // pred_check
    _
  $region27: #{vae_forward.1} parent=0 // pred_check_branch
    %30 = sbr.rel (0) target = $region29
  $region28: #{vae_forward.1} parent=0 // pred_region
    _
  $region29: #{vae_forward.1} parent=0 // pred_fallthru
    _
  // Predicated region
  $region30: #{vae_forward.1} parent=0 // pred_check
    _
  $region31: #{vae_forward.1} parent=0 // pred_check_branch
    %32 = sbr.rel (0) target = $region33
  $region32: #{vae_forward.1} parent=0 // pred_region
    _
  $region33: #{vae_forward.1} parent=0 // pred_fallthru
    _
  // Predicated region
  $region34: #{vae_forward.1} parent=0 // pred_check
    _
  $region35: #{vae_forward.1} parent=0 // pred_check_branch
    %34 = sbr.rel (0) target = $region37
  $region36: #{vae_forward.1} parent=0 // pred_region
    _
  $region37: #{vae_forward.1} parent=0 // pred_fallthru
    _
  // Predicated region
  $region38: #{vae_forward.1} parent=0 // pred_check
    _
  $region39: #{vae_forward.1} parent=0 // pred_check_branch
    %36 = sbr.rel (0) target = $region41
  $region40: #{vae_forward.1} parent=0 // pred_region
    _
  $region41: #{vae_forward.1} parent=0 // pred_fallthru
    _
  %v37 = vld [vmem:[%s0] sm:$0xff]
  %v38 = vld [vmem:[%s0 + $0x8] sm:$0xff]
  %v39 = vld [vmem:[%s0 + $0x10] sm:$0xff]
  %v40 = vld [vmem:[%s0 + $0x18] sm:$0xff]
  %v41 = vld [vmem:[%s0 + $0x20] sm:$0xff]
  %v42 = vld [vmem:[%s0 + $0x28] sm:$0xff]
  %v43 = vld [vmem:[%s0 + $0x30] sm:$0xff]
  %v44 = vld [vmem:[%s0 + $0x38] sm:$0xff]
  %v45 = vld [vmem:[%s2] sm:$0xff]
  %v46 = vld [vmem:[%s2 + $0x8] sm:$0xff]
  %v47 = vld [vmem:[%s2 + $0x10] sm:$0xff]
  %v48 = vld [vmem:[%s2 + $0x18] sm:$0xff]
  %v49 = vld [vmem:[%s2 + $0x20] sm:$0xff]
  %v50 = vld [vmem:[%s2 + $0x28] sm:$0xff]
  %v51 = vld [vmem:[%s2 + $0x30] sm:$0xff]
  %v52 = vld [vmem:[%s2 + $0x38] sm:$0xff]
  %v53 = vld [vmem:[%s2 + $0x40] sm:$0xff]
  %v54 = vld [vmem:[%s2 + $0x48] sm:$0xff]
  %v55 = vld [vmem:[%s2 + $0x50] sm:$0xff]
  %v56 = vld [vmem:[%s2 + $0x58] sm:$0xff]
  %v57 = vld [vmem:[%s2 + $0x60] sm:$0xff]
  %v58 = vld [vmem:[%s2 + $0x68] sm:$0xff]
  %v59 = vld [vmem:[%s2 + $0x70] sm:$0xff]
  %v60 = vld [vmem:[%s2 + $0x78] sm:$0xff]
  %v61 = vld [vmem:[%s2 + $0x80] sm:$0xff]
  %v62 = vld [vmem:[%s2 + $0x88] sm:$0xff]
  %v63 = vld [vmem:[%s2 + $0x90] sm:$0xff]
  %v64 = vld [vmem:[%s2 + $0x98] sm:$0xff]
  %v65 = vld [vmem:[%s2 + $0xa0] sm:$0xff]
  %v66 = vld [vmem:[%s2 + $0xa8] sm:$0xff]
  %v67 = vld [vmem:[%s2 + $0xb0] sm:$0xff]
  %v68 = vld [vmem:[%s2 + $0xb8] sm:$0xff]
  %v69 = vld [vmem:[%s2 + $0xc0] sm:$0xff]
  %v70 = vld [vmem:[%s2 + $0xc8] sm:$0xff]
  %v71 = vld [vmem:[%s2 + $0xd0] sm:$0xff]
  %v72 = vld [vmem:[%s2 + $0xd8] sm:$0xff]
  %v73 = vld [vmem:[%s2 + $0xe0] sm:$0xff]
  %v74 = vld [vmem:[%s2 + $0xe8] sm:$0xff]
  %v75 = vld [vmem:[%s2 + $0xf0] sm:$0xff]
  %v76 = vld [vmem:[%s2 + $0xf8] sm:$0xff]
  %v77 = vld [vmem:[%s2 + $0x100] sm:$0xff]
  %v78 = vld [vmem:[%s2 + $0x108] sm:$0xff]
  %v79 = vld [vmem:[%s2 + $0x110] sm:$0xff]
  %v80 = vld [vmem:[%s2 + $0x118] sm:$0xff]
  %v81 = vld [vmem:[%s2 + $0x120] sm:$0xff]
  %v82 = vld [vmem:[%s2 + $0x128] sm:$0xff]
  %v83 = vld [vmem:[%s2 + $0x130] sm:$0xff]
  %v84 = vld [vmem:[%s2 + $0x138] sm:$0xff]
  %v85 = vld [vmem:[%s2 + $0x140] sm:$0xff]
  %v86 = vld [vmem:[%s2 + $0x148] sm:$0xff]
  %v87 = vld [vmem:[%s2 + $0x150] sm:$0xff]
  %v88 = vld [vmem:[%s2 + $0x158] sm:$0xff]
  %v89 = vld [vmem:[%s2 + $0x160] sm:$0xff]
  %v90 = vld [vmem:[%s2 + $0x168] sm:$0xff]
  %v91 = vld [vmem:[%s2 + $0x170] sm:$0xff]
  %v92 = vld [vmem:[%s2 + $0x178] sm:$0xff]
  %v93 = vld [vmem:[%s2 + $0x180] sm:$0xff]
  %v94 = vld [vmem:[%s2 + $0x188] sm:$0xff]
  %v95 = vld [vmem:[%s2 + $0x190] sm:$0xff]
  %v96 = vld [vmem:[%s2 + $0x198] sm:$0xff]
  %v97 = vld [vmem:[%s2 + $0x1a0] sm:$0xff]
  %v98 = vld [vmem:[%s2 + $0x1a8] sm:$0xff]
  %v99 = vld [vmem:[%s2 + $0x1b0] sm:$0xff]
  %v100 = vld [vmem:[%s2 + $0x1b8] sm:$0xff]
  %v101 = vld [vmem:[%s2 + $0x1c0] sm:$0xff]
  %v102 = vld [vmem:[%s2 + $0x1c8] sm:$0xff]
  %v103 = vld [vmem:[%s2 + $0x1d0] sm:$0xff]
  %v104 = vld [vmem:[%s2 + $0x1d8] sm:$0xff]
  %v105 = vld [vmem:[%s2 + $0x1e0] sm:$0xff]
  %v106 = vld [vmem:[%s2 + $0x1e8] sm:$0xff]
  %v107 = vld [vmem:[%s2 + $0x1f0] sm:$0xff]
  %v108 = vld [vmem:[%s2 + $0x1f8] sm:$0xff]
  %v109 = vld [vmem:[%s2 + $0x200] sm:$0xff]
  %v110 = vld [vmem:[%s2 + $0x208] sm:$0xff]
  %v111 = vld [vmem:[%s2 + $0x210] sm:$0xff]
  %v112 = vld [vmem:[%s2 + $0x218] sm:$0xff]
  %v113 = vld [vmem:[%s2 + $0x220] sm:$0xff]
  %v114 = vld [vmem:[%s2 + $0x228] sm:$0xff]
  %v115 = vld [vmem:[%s2 + $0x230] sm:$0xff]
  %v116 = vld [vmem:[%s2 + $0x238] sm:$0xff]
  %v117 = vld [vmem:[%s2 + $0x240] sm:$0xff]
  %v118 = vld [vmem:[%s2 + $0x248] sm:$0xff]
  %v119 = vld [vmem:[%s2 + $0x250] sm:$0xff]
  %v120 = vld [vmem:[%s2 + $0x258] sm:$0xff]
  %v121 = vld [vmem:[%s2 + $0x260] sm:$0xff]
  %v122 = vld [vmem:[%s2 + $0x268] sm:$0xff]
  %v123 = vld [vmem:[%s2 + $0x270] sm:$0xff]
  %v124 = vld [vmem:[%s2 + $0x278] sm:$0xff]
  %v125 = vld [vmem:[%s2 + $0x280] sm:$0xff]
  %v126 = vld [vmem:[%s2 + $0x288] sm:$0xff]
  %v127 = vld [vmem:[%s2 + $0x290] sm:$0xff]
  %v128 = vld [vmem:[%s2 + $0x298] sm:$0xff]
  %v129 = vld [vmem:[%s2 + $0x2a0] sm:$0xff]
  %v130 = vld [vmem:[%s2 + $0x2a8] sm:$0xff]
  %v131 = vld [vmem:[%s2 + $0x2b0] sm:$0xff]
  %v132 = vld [vmem:[%s2 + $0x2b8] sm:$0xff]
  %v133 = vld [vmem:[%s2 + $0x2c0] sm:$0xff]
  %v134 = vld [vmem:[%s2 + $0x2c8] sm:$0xff]
  %v135 = vld [vmem:[%s2 + $0x2d0] sm:$0xff]
  %v136 = vld [vmem:[%s2 + $0x2d8] sm:$0xff]
  %v137 = vld [vmem:[%s2 + $0x2e0] sm:$0xff]
  %v138 = vld [vmem:[%s2 + $0x2e8] sm:$0xff]
  %v139 = vld [vmem:[%s2 + $0x2f0] sm:$0xff]
  %v140 = vld [vmem:[%s2 + $0x2f8] sm:$0xff]
  %v141 = vld [vmem:[%s2 + $0x300] sm:$0xff]
  %v142 = vld [vmem:[%s2 + $0x308] sm:$0xff]
  %v143 = vld [vmem:[%s2 + $0x310] sm:$0xff]
  %v144 = vld [vmem:[%s2 + $0x318] sm:$0xff]
  %v145 = vld [vmem:[%s2 + $0x320] sm:$0xff]
  %v146 = vld [vmem:[%s2 + $0x328] sm:$0xff]
  %v147 = vld [vmem:[%s2 + $0x330] sm:$0xff]
  %v148 = vld [vmem:[%s2 + $0x338] sm:$0xff]
  %v149 = vld [vmem:[%s2 + $0x340] sm:$0xff]
  %v150 = vld [vmem:[%s2 + $0x348] sm:$0xff]
  %v151 = vld [vmem:[%s2 + $0x350] sm:$0xff]
  %v152 = vld [vmem:[%s2 + $0x358] sm:$0xff]
  %v153 = vld [vmem:[%s2 + $0x360] sm:$0xff]
  %v154 = vld [vmem:[%s2 + $0x368] sm:$0xff]
  %v155 = vld [vmem:[%s2 + $0x370] sm:$0xff]
  %v156 = vld [vmem:[%s2 + $0x378] sm:$0xff]
  %v157 = vld [vmem:[%s2 + $0x380] sm:$0xff]
  %v158 = vld [vmem:[%s2 + $0x388] sm:$0xff]
  %v159 = vld [vmem:[%s2 + $0x390] sm:$0xff]
  %v160 = vld [vmem:[%s2 + $0x398] sm:$0xff]
  %v161 = vld [vmem:[%s2 + $0x3a0] sm:$0xff]
  %v162 = vld [vmem:[%s2 + $0x3a8] sm:$0xff]
  %v163 = vld [vmem:[%s2 + $0x3b0] sm:$0xff]
  %v164 = vld [vmem:[%s2 + $0x3b8] sm:$0xff]
  %v165 = vld [vmem:[%s2 + $0x3c0] sm:$0xff]
  %v166 = vld [vmem:[%s2 + $0x3c8] sm:$0xff]
  %v167 = vld [vmem:[%s2 + $0x3d0] sm:$0xff]
  %v168 = vld [vmem:[%s2 + $0x3d8] sm:$0xff]
  %v169 = vld [vmem:[%s2 + $0x3e0] sm:$0xff]
  %v170 = vld [vmem:[%s2 + $0x3e8] sm:$0xff]
  %v171 = vld [vmem:[%s2 + $0x3f0] sm:$0xff]
  %v172 = vld [vmem:[%s2 + $0x3f8] sm:$0xff]
  %v173 = vld [vmem:[%s3] sm:$0x3]
  %v175 = vperm.slane %v173, 0
  %v176 = vperm.slane %v173, 1
  %v187 = vunpack.c.l.b16 %v37
  %v188 = vunpack.c.h.b16 %v37
  %v189 = vunpack.c.l.b16 %v38
  %v190 = vunpack.c.h.b16 %v38
  %v191 = vunpack.c.l.b16 %v39
  %v192 = vunpack.c.h.b16 %v39
  %v193 = vunpack.c.l.b16 %v40
  %v194 = vunpack.c.h.b16 %v40
  %v195 = vunpack.c.l.b16 %v41
  %v196 = vunpack.c.h.b16 %v41
  %v197 = vunpack.c.l.b16 %v42
  %v198 = vunpack.c.h.b16 %v42
  %v199 = vunpack.c.l.b16 %v43
  %v200 = vunpack.c.h.b16 %v43
  %v201 = vunpack.c.l.b16 %v44
  %v202 = vunpack.c.h.b16 %v44
  %v203 = vpack.c.b16 %v195, %v187
  %v204 = vpack.c.b16 %v196, %v188
  %v205 = vpack.c.b16 %v197, %v189
  %v206 = vpack.c.b16 %v198, %v190
  %v207 = vpack.c.b16 %v199, %v191
  %v208 = vpack.c.b16 %v200, %v192
  %v209 = vpack.c.b16 %v201, %v193
  %v210 = vpack.c.b16 %v202, %v194
  %v347 = vunpack.c.l.b16 %v45
  %v348 = vunpack.c.h.b16 %v45
  %v349 = vunpack.c.l.b16 %v46
  %v350 = vunpack.c.h.b16 %v46
  %v351 = vunpack.c.l.b16 %v47
  %v352 = vunpack.c.h.b16 %v47
  %v353 = vunpack.c.l.b16 %v48
  %v354 = vunpack.c.h.b16 %v48
  %v355 = vunpack.c.l.b16 %v49
  %v356 = vunpack.c.h.b16 %v49
  %v357 = vunpack.c.l.b16 %v50
  %v358 = vunpack.c.h.b16 %v50
  %v359 = vunpack.c.l.b16 %v51
  %v360 = vunpack.c.h.b16 %v51
  %v361 = vunpack.c.l.b16 %v52
  %v362 = vunpack.c.h.b16 %v52
  %v363 = vunpack.c.l.b16 %v53
  %v364 = vunpack.c.h.b16 %v53
  %v365 = vunpack.c.l.b16 %v54
  %v366 = vunpack.c.h.b16 %v54
  %v367 = vunpack.c.l.b16 %v55
  %v368 = vunpack.c.h.b16 %v55
  %v369 = vunpack.c.l.b16 %v56
  %v370 = vunpack.c.h.b16 %v56
  %v371 = vunpack.c.l.b16 %v57
  %v372 = vunpack.c.h.b16 %v57
  %v373 = vunpack.c.l.b16 %v58
  %v374 = vunpack.c.h.b16 %v58
  %v375 = vunpack.c.l.b16 %v59
  %v376 = vunpack.c.h.b16 %v59
  %v377 = vunpack.c.l.b16 %v60
  %v378 = vunpack.c.h.b16 %v60
  %v379 = vunpack.c.l.b16 %v61
  %v380 = vunpack.c.h.b16 %v61
  %v381 = vunpack.c.l.b16 %v62
  %v382 = vunpack.c.h.b16 %v62
  %v383 = vunpack.c.l.b16 %v63
  %v384 = vunpack.c.h.b16 %v63
  %v385 = vunpack.c.l.b16 %v64
  %v386 = vunpack.c.h.b16 %v64
  %v387 = vunpack.c.l.b16 %v65
  %v388 = vunpack.c.h.b16 %v65
  %v389 = vunpack.c.l.b16 %v66
  %v390 = vunpack.c.h.b16 %v66
  %v391 = vunpack.c.l.b16 %v67
  %v392 = vunpack.c.h.b16 %v67
  %v393 = vunpack.c.l.b16 %v68
  %v394 = vunpack.c.h.b16 %v68
  %v395 = vunpack.c.l.b16 %v69
  %v396 = vunpack.c.h.b16 %v69
  %v397 = vunpack.c.l.b16 %v70
  %v398 = vunpack.c.h.b16 %v70
  %v399 = vunpack.c.l.b16 %v71
  %v400 = vunpack.c.h.b16 %v71
  %v401 = vunpack.c.l.b16 %v72
  %v402 = vunpack.c.h.b16 %v72
  %v403 = vunpack.c.l.b16 %v73
  %v404 = vunpack.c.h.b16 %v73
  %v405 = vunpack.c.l.b16 %v74
  %v406 = vunpack.c.h.b16 %v74
  %v407 = vunpack.c.l.b16 %v75
  %v408 = vunpack.c.h.b16 %v75
  %v409 = vunpack.c.l.b16 %v76
  %v410 = vunpack.c.h.b16 %v76
  %v411 = vunpack.c.l.b16 %v77
  %v412 = vunpack.c.h.b16 %v77
  %v413 = vunpack.c.l.b16 %v78
  %v414 = vunpack.c.h.b16 %v78
  %v415 = vunpack.c.l.b16 %v79
  %v416 = vunpack.c.h.b16 %v79
  %v417 = vunpack.c.l.b16 %v80
  %v418 = vunpack.c.h.b16 %v80
  %v419 = vunpack.c.l.b16 %v81
  %v420 = vunpack.c.h.b16 %v81
  %v421 = vunpack.c.l.b16 %v82
  %v422 = vunpack.c.h.b16 %v82
  %v423 = vunpack.c.l.b16 %v83
  %v424 = vunpack.c.h.b16 %v83
  %v425 = vunpack.c.l.b16 %v84
  %v426 = vunpack.c.h.b16 %v84
  %v427 = vunpack.c.l.b16 %v85
  %v428 = vunpack.c.h.b16 %v85
  %v429 = vunpack.c.l.b16 %v86
  %v430 = vunpack.c.h.b16 %v86
  %v431 = vunpack.c.l.b16 %v87
  %v432 = vunpack.c.h.b16 %v87
  %v433 = vunpack.c.l.b16 %v88
  %v434 = vunpack.c.h.b16 %v88
  %v435 = vunpack.c.l.b16 %v89
  %v436 = vunpack.c.h.b16 %v89
  %v437 = vunpack.c.l.b16 %v90
  %v438 = vunpack.c.h.b16 %v90
  %v439 = vunpack.c.l.b16 %v91
  %v440 = vunpack.c.h.b16 %v91
  %v441 = vunpack.c.l.b16 %v92
  %v442 = vunpack.c.h.b16 %v92
  %v443 = vunpack.c.l.b16 %v93
  %v444 = vunpack.c.h.b16 %v93
  %v445 = vunpack.c.l.b16 %v94
  %v446 = vunpack.c.h.b16 %v94
  %v447 = vunpack.c.l.b16 %v95
  %v448 = vunpack.c.h.b16 %v95
  %v449 = vunpack.c.l.b16 %v96
  %v450 = vunpack.c.h.b16 %v96
  %v451 = vunpack.c.l.b16 %v97
  %v452 = vunpack.c.h.b16 %v97
  %v453 = vunpack.c.l.b16 %v98
  %v454 = vunpack.c.h.b16 %v98
  %v455 = vunpack.c.l.b16 %v99
  %v456 = vunpack.c.h.b16 %v99
  %v457 = vunpack.c.l.b16 %v100
  %v458 = vunpack.c.h.b16 %v100
  %v459 = vunpack.c.l.b16 %v101
  %v460 = vunpack.c.h.b16 %v101
  %v461 = vunpack.c.l.b16 %v102
  %v462 = vunpack.c.h.b16 %v102
  %v463 = vunpack.c.l.b16 %v103
  %v464 = vunpack.c.h.b16 %v103
  %v465 = vunpack.c.l.b16 %v104
  %v466 = vunpack.c.h.b16 %v104
  %v467 = vunpack.c.l.b16 %v105
  %v468 = vunpack.c.h.b16 %v105
  %v469 = vunpack.c.l.b16 %v106
  %v470 = vunpack.c.h.b16 %v106
  %v471 = vunpack.c.l.b16 %v107
  %v472 = vunpack.c.h.b16 %v107
  %v473 = vunpack.c.l.b16 %v108
  %v474 = vunpack.c.h.b16 %v108
  %v475 = vunpack.c.l.b16 %v109
  %v476 = vunpack.c.h.b16 %v109
  %v477 = vunpack.c.l.b16 %v110
  %v478 = vunpack.c.h.b16 %v110
  %v479 = vunpack.c.l.b16 %v111
  %v480 = vunpack.c.h.b16 %v111
  %v481 = vunpack.c.l.b16 %v112
  %v482 = vunpack.c.h.b16 %v112
  %v483 = vunpack.c.l.b16 %v113
  %v484 = vunpack.c.h.b16 %v113
  %v485 = vunpack.c.l.b16 %v114
  %v486 = vunpack.c.h.b16 %v114
  %v487 = vunpack.c.l.b16 %v115
  %v488 = vunpack.c.h.b16 %v115
  %v489 = vunpack.c.l.b16 %v116
  %v490 = vunpack.c.h.b16 %v116
  %v491 = vunpack.c.l.b16 %v117
  %v492 = vunpack.c.h.b16 %v117
  %v493 = vunpack.c.l.b16 %v118
  %v494 = vunpack.c.h.b16 %v118
  %v495 = vunpack.c.l.b16 %v119
  %v496 = vunpack.c.h.b16 %v119
  %v497 = vunpack.c.l.b16 %v120
  %v498 = vunpack.c.h.b16 %v120
  %v499 = vunpack.c.l.b16 %v121
  %v500 = vunpack.c.h.b16 %v121
  %v501 = vunpack.c.l.b16 %v122
  %v502 = vunpack.c.h.b16 %v122
  %v503 = vunpack.c.l.b16 %v123
  %v504 = vunpack.c.h.b16 %v123
  %v505 = vunpack.c.l.b16 %v124
  %v506 = vunpack.c.h.b16 %v124
  %v507 = vunpack.c.l.b16 %v125
  %v508 = vunpack.c.h.b16 %v125
  %v509 = vunpack.c.l.b16 %v126
  %v510 = vunpack.c.h.b16 %v126
  %v511 = vunpack.c.l.b16 %v127
  %v512 = vunpack.c.h.b16 %v127
  %v513 = vunpack.c.l.b16 %v128
  %v514 = vunpack.c.h.b16 %v128
  %v515 = vunpack.c.l.b16 %v129
  %v516 = vunpack.c.h.b16 %v129
  %v517 = vunpack.c.l.b16 %v130
  %v518 = vunpack.c.h.b16 %v130
  %v519 = vunpack.c.l.b16 %v131
  %v520 = vunpack.c.h.b16 %v131
  %v521 = vunpack.c.l.b16 %v132
  %v522 = vunpack.c.h.b16 %v132
  %v523 = vunpack.c.l.b16 %v133
  %v524 = vunpack.c.h.b16 %v133
  %v525 = vunpack.c.l.b16 %v134
  %v526 = vunpack.c.h.b16 %v134
  %v527 = vunpack.c.l.b16 %v135
  %v528 = vunpack.c.h.b16 %v135
  %v529 = vunpack.c.l.b16 %v136
  %v530 = vunpack.c.h.b16 %v136
  %v531 = vunpack.c.l.b16 %v137
  %v532 = vunpack.c.h.b16 %v137
  %v533 = vunpack.c.l.b16 %v138
  %v534 = vunpack.c.h.b16 %v138
  %v535 = vunpack.c.l.b16 %v139
  %v536 = vunpack.c.h.b16 %v139
  %v537 = vunpack.c.l.b16 %v140
  %v538 = vunpack.c.h.b16 %v140
  %v539 = vunpack.c.l.b16 %v141
  %v540 = vunpack.c.h.b16 %v141
  %v541 = vunpack.c.l.b16 %v142
  %v542 = vunpack.c.h.b16 %v142
  %v543 = vunpack.c.l.b16 %v143
  %v544 = vunpack.c.h.b16 %v143
  %v545 = vunpack.c.l.b16 %v144
  %v546 = vunpack.c.h.b16 %v144
  %v547 = vunpack.c.l.b16 %v145
  %v548 = vunpack.c.h.b16 %v145
  %v549 = vunpack.c.l.b16 %v146
  %v550 = vunpack.c.h.b16 %v146
  %v551 = vunpack.c.l.b16 %v147
  %v552 = vunpack.c.h.b16 %v147
  %v553 = vunpack.c.l.b16 %v148
  %v554 = vunpack.c.h.b16 %v148
  %v555 = vunpack.c.l.b16 %v149
  %v556 = vunpack.c.h.b16 %v149
  %v557 = vunpack.c.l.b16 %v150
  %v558 = vunpack.c.h.b16 %v150
  %v559 = vunpack.c.l.b16 %v151
  %v560 = vunpack.c.h.b16 %v151
  %v561 = vunpack.c.l.b16 %v152
  %v562 = vunpack.c.h.b16 %v152
  %v563 = vunpack.c.l.b16 %v153
  %v564 = vunpack.c.h.b16 %v153
  %v565 = vunpack.c.l.b16 %v154
  %v566 = vunpack.c.h.b16 %v154
  %v567 = vunpack.c.l.b16 %v155
  %v568 = vunpack.c.h.b16 %v155
  %v569 = vunpack.c.l.b16 %v156
  %v570 = vunpack.c.h.b16 %v156
  %v571 = vunpack.c.l.b16 %v157
  %v572 = vunpack.c.h.b16 %v157
  %v573 = vunpack.c.l.b16 %v158
  %v574 = vunpack.c.h.b16 %v158
  %v575 = vunpack.c.l.b16 %v159
  %v576 = vunpack.c.h.b16 %v159
  %v577 = vunpack.c.l.b16 %v160
  %v578 = vunpack.c.h.b16 %v160
  %v579 = vunpack.c.l.b16 %v161
  %v580 = vunpack.c.h.b16 %v161
  %v581 = vunpack.c.l.b16 %v162
  %v582 = vunpack.c.h.b16 %v162
  %v583 = vunpack.c.l.b16 %v163
  %v584 = vunpack.c.h.b16 %v163
  %v585 = vunpack.c.l.b16 %v164
  %v586 = vunpack.c.h.b16 %v164
  %v587 = vunpack.c.l.b16 %v165
  %v588 = vunpack.c.h.b16 %v165
  %v589 = vunpack.c.l.b16 %v166
  %v590 = vunpack.c.h.b16 %v166
  %v591 = vunpack.c.l.b16 %v167
  %v592 = vunpack.c.h.b16 %v167
  %v593 = vunpack.c.l.b16 %v168
  %v594 = vunpack.c.h.b16 %v168
  %v595 = vunpack.c.l.b16 %v169
  %v596 = vunpack.c.h.b16 %v169
  %v597 = vunpack.c.l.b16 %v170
  %v598 = vunpack.c.h.b16 %v170
  %v599 = vunpack.c.l.b16 %v171
  %v600 = vunpack.c.h.b16 %v171
  %v601 = vunpack.c.l.b16 %v172
  %v602 = vunpack.c.h.b16 %v172
  %v603 = vpack.c.b16 %v349, %v347
  %v604 = vpack.c.b16 %v350, %v348
  %v605 = vpack.c.b16 %v353, %v351
  %v606 = vpack.c.b16 %v354, %v352
  %v607 = vpack.c.b16 %v357, %v355
  %v608 = vpack.c.b16 %v358, %v356
  %v609 = vpack.c.b16 %v361, %v359
  %v610 = vpack.c.b16 %v362, %v360
  %v611 = vpack.c.b16 %v365, %v363
  %v612 = vpack.c.b16 %v366, %v364
  %v613 = vpack.c.b16 %v369, %v367
  %v614 = vpack.c.b16 %v370, %v368
  %v615 = vpack.c.b16 %v373, %v371
  %v616 = vpack.c.b16 %v374, %v372
  %v617 = vpack.c.b16 %v377, %v375
  %v618 = vpack.c.b16 %v378, %v376
  %v619 = vpack.c.b16 %v381, %v379
  %v620 = vpack.c.b16 %v382, %v380
  %v621 = vpack.c.b16 %v385, %v383
  %v622 = vpack.c.b16 %v386, %v384
  %v623 = vpack.c.b16 %v389, %v387
  %v624 = vpack.c.b16 %v390, %v388
  %v625 = vpack.c.b16 %v393, %v391
  %v626 = vpack.c.b16 %v394, %v392
  %v627 = vpack.c.b16 %v397, %v395
  %v628 = vpack.c.b16 %v398, %v396
  %v629 = vpack.c.b16 %v401, %v399
  %v630 = vpack.c.b16 %v402, %v400
  %v631 = vpack.c.b16 %v405, %v403
  %v632 = vpack.c.b16 %v406, %v404
  %v633 = vpack.c.b16 %v409, %v407
  %v634 = vpack.c.b16 %v410, %v408
  %v635 = vpack.c.b16 %v413, %v411
  %v636 = vpack.c.b16 %v414, %v412
  %v637 = vpack.c.b16 %v417, %v415
  %v638 = vpack.c.b16 %v418, %v416
  %v639 = vpack.c.b16 %v421, %v419
  %v640 = vpack.c.b16 %v422, %v420
  %v641 = vpack.c.b16 %v425, %v423
  %v642 = vpack.c.b16 %v426, %v424
  %v643 = vpack.c.b16 %v429, %v427
  %v644 = vpack.c.b16 %v430, %v428
  %v645 = vpack.c.b16 %v433, %v431
  %v646 = vpack.c.b16 %v434, %v432
  %v647 = vpack.c.b16 %v437, %v435
  %v648 = vpack.c.b16 %v438, %v436
  %v649 = vpack.c.b16 %v441, %v439
  %v650 = vpack.c.b16 %v442, %v440
  %v651 = vpack.c.b16 %v445, %v443
  %v652 = vpack.c.b16 %v446, %v444
  %v653 = vpack.c.b16 %v449, %v447
  %v654 = vpack.c.b16 %v450, %v448
  %v655 = vpack.c.b16 %v453, %v451
  %v656 = vpack.c.b16 %v454, %v452
  %v657 = vpack.c.b16 %v457, %v455
  %v658 = vpack.c.b16 %v458, %v456
  %v659 = vpack.c.b16 %v461, %v459
  %v660 = vpack.c.b16 %v462, %v460
  %v661 = vpack.c.b16 %v465, %v463
  %v662 = vpack.c.b16 %v466, %v464
  %v663 = vpack.c.b16 %v469, %v467
  %v664 = vpack.c.b16 %v470, %v468
  %v665 = vpack.c.b16 %v473, %v471
  %v666 = vpack.c.b16 %v474, %v472
  %v667 = vpack.c.b16 %v477, %v475
  %v668 = vpack.c.b16 %v478, %v476
  %v669 = vpack.c.b16 %v481, %v479
  %v670 = vpack.c.b16 %v482, %v480
  %v671 = vpack.c.b16 %v485, %v483
  %v672 = vpack.c.b16 %v486, %v484
  %v673 = vpack.c.b16 %v489, %v487
  %v674 = vpack.c.b16 %v490, %v488
  %v675 = vpack.c.b16 %v493, %v491
  %v676 = vpack.c.b16 %v494, %v492
  %v677 = vpack.c.b16 %v497, %v495
  %v678 = vpack.c.b16 %v498, %v496
  %v679 = vpack.c.b16 %v501, %v499
  %v680 = vpack.c.b16 %v502, %v500
  %v681 = vpack.c.b16 %v505, %v503
  %v682 = vpack.c.b16 %v506, %v504
  %v683 = vpack.c.b16 %v509, %v507
  %v684 = vpack.c.b16 %v510, %v508
  %v685 = vpack.c.b16 %v513, %v511
  %v686 = vpack.c.b16 %v514, %v512
  %v687 = vpack.c.b16 %v517, %v515
  %v688 = vpack.c.b16 %v518, %v516
  %v689 = vpack.c.b16 %v521, %v519
  %v690 = vpack.c.b16 %v522, %v520
  %v691 = vpack.c.b16 %v525, %v523
  %v692 = vpack.c.b16 %v526, %v524
  %v693 = vpack.c.b16 %v529, %v527
  %v694 = vpack.c.b16 %v530, %v528
  %v695 = vpack.c.b16 %v533, %v531
  %v696 = vpack.c.b16 %v534, %v532
  %v697 = vpack.c.b16 %v537, %v535
  %v698 = vpack.c.b16 %v538, %v536
  %v699 = vpack.c.b16 %v541, %v539
  %v700 = vpack.c.b16 %v542, %v540
  %v701 = vpack.c.b16 %v545, %v543
  %v702 = vpack.c.b16 %v546, %v544
  %v703 = vpack.c.b16 %v549, %v547
  %v704 = vpack.c.b16 %v550, %v548
  %v705 = vpack.c.b16 %v553, %v551
  %v706 = vpack.c.b16 %v554, %v552
  %v707 = vpack.c.b16 %v557, %v555
  %v708 = vpack.c.b16 %v558, %v556
  %v709 = vpack.c.b16 %v561, %v559
  %v710 = vpack.c.b16 %v562, %v560
  %v711 = vpack.c.b16 %v565, %v563
  %v712 = vpack.c.b16 %v566, %v564
  %v713 = vpack.c.b16 %v569, %v567
  %v714 = vpack.c.b16 %v570, %v568
  %v715 = vpack.c.b16 %v573, %v571
  %v716 = vpack.c.b16 %v574, %v572
  %v717 = vpack.c.b16 %v577, %v575
  %v718 = vpack.c.b16 %v578, %v576
  %v719 = vpack.c.b16 %v581, %v579
  %v720 = vpack.c.b16 %v582, %v580
  %v721 = vpack.c.b16 %v585, %v583
  %v722 = vpack.c.b16 %v586, %v584
  %v723 = vpack.c.b16 %v589, %v587
  %v724 = vpack.c.b16 %v590, %v588
  %v725 = vpack.c.b16 %v593, %v591
  %v726 = vpack.c.b16 %v594, %v592
  %v727 = vpack.c.b16 %v597, %v595
  %v728 = vpack.c.b16 %v598, %v596
  %v729 = vpack.c.b16 %v601, %v599
  %v730 = vpack.c.b16 %v602, %v600
  %859 = vmatpush.bf16.msra.mxu0 %v617
  %860 = vmatpush.bf16.msra.mxu0 %v615
  %861 = vmatpush.bf16.msra.mxu0 %v613
  %862 = vmatpush.bf16.msra.mxu0 %v611
  %863 = vmatpush.bf16.msra.mxu0 %v609
  %864 = vmatpush.bf16.msra.mxu0 %v607
  %865 = vmatpush.bf16.msra.mxu0 %v605
  %866 = vmatpush.bf16.msra.mxu0 %v603
  %867 = vmatmul.bf16.gmra.mxu0 %v203
  %v868 = vpop.f32.mrf.mxu0
  %v869 = vadd.f32 %v175, %v868
  %v870 = vpop.f32.mrf.mxu0
  %v871 = vadd.f32 %v175, %v870
  %872 = vdwg.mxu0
  %873 = vmatpush.bf16.msra.mxu0 %v633
  %874 = vmatpush.bf16.msra.mxu0 %v631
  %875 = vmatpush.bf16.msra.mxu0 %v629
  %876 = vmatpush.bf16.msra.mxu0 %v627
  %877 = vmatpush.bf16.msra.mxu0 %v625
  %878 = vmatpush.bf16.msra.mxu0 %v623
  %879 = vmatpush.bf16.msra.mxu0 %v621
  %880 = vmatpush.bf16.msra.mxu0 %v619
  %881 = vmatmul.bf16.gmra.mxu0 %v204
  %v882 = vpop.f32.mrf.mxu0
  %v883 = vadd.f32 %v869, %v882
  %v884 = vpop.f32.mrf.mxu0
  %v885 = vadd.f32 %v871, %v884
  %886 = vdwg.mxu0
  %887 = vmatpush.bf16.msra.mxu0 %v649
  %888 = vmatpush.bf16.msra.mxu0 %v647
  %889 = vmatpush.bf16.msra.mxu0 %v645
  %890 = vmatpush.bf16.msra.mxu0 %v643
  %891 = vmatpush.bf16.msra.mxu0 %v641
  %892 = vmatpush.bf16.msra.mxu0 %v639
  %893 = vmatpush.bf16.msra.mxu0 %v637
  %894 = vmatpush.bf16.msra.mxu0 %v635
  %895 = vmatmul.bf16.gmra.mxu0 %v205
  %v896 = vpop.f32.mrf.mxu0
  %v897 = vadd.f32 %v883, %v896
  %v898 = vpop.f32.mrf.mxu0
  %v899 = vadd.f32 %v885, %v898
  %900 = vdwg.mxu0
  %901 = vmatpush.bf16.msra.mxu0 %v665
  %902 = vmatpush.bf16.msra.mxu0 %v663
  %903 = vmatpush.bf16.msra.mxu0 %v661
  %904 = vmatpush.bf16.msra.mxu0 %v659
  %905 = vmatpush.bf16.msra.mxu0 %v657
  %906 = vmatpush.bf16.msra.mxu0 %v655
  %907 = vmatpush.bf16.msra.mxu0 %v653
  %908 = vmatpush.bf16.msra.mxu0 %v651
  %909 = vmatmul.bf16.gmra.mxu0 %v206
  %v910 = vpop.f32.mrf.mxu0
  %v911 = vadd.f32 %v897, %v910
  %v912 = vpop.f32.mrf.mxu0
  %v913 = vadd.f32 %v899, %v912
  %914 = vdwg.mxu0
  %915 = vmatpush.bf16.msra.mxu0 %v681
  %916 = vmatpush.bf16.msra.mxu0 %v679
  %917 = vmatpush.bf16.msra.mxu0 %v677
  %918 = vmatpush.bf16.msra.mxu0 %v675
  %919 = vmatpush.bf16.msra.mxu0 %v673
  %920 = vmatpush.bf16.msra.mxu0 %v671
  %921 = vmatpush.bf16.msra.mxu0 %v669
  %922 = vmatpush.bf16.msra.mxu0 %v667
  %923 = vmatmul.bf16.gmra.mxu0 %v207
  %v924 = vpop.f32.mrf.mxu0
  %v925 = vadd.f32 %v911, %v924
  %v926 = vpop.f32.mrf.mxu0
  %v927 = vadd.f32 %v913, %v926
  %928 = vdwg.mxu0
  %929 = vmatpush.bf16.msra.mxu0 %v697
  %930 = vmatpush.bf16.msra.mxu0 %v695
  %931 = vmatpush.bf16.msra.mxu0 %v693
  %932 = vmatpush.bf16.msra.mxu0 %v691
  %933 = vmatpush.bf16.msra.mxu0 %v689
  %934 = vmatpush.bf16.msra.mxu0 %v687
  %935 = vmatpush.bf16.msra.mxu0 %v685
  %936 = vmatpush.bf16.msra.mxu0 %v683
  %937 = vmatmul.bf16.gmra.mxu0 %v208
  %v938 = vpop.f32.mrf.mxu0
  %v939 = vadd.f32 %v925, %v938
  %v940 = vpop.f32.mrf.mxu0
  %v941 = vadd.f32 %v927, %v940
  %942 = vdwg.mxu0
  %943 = vmatpush.bf16.msra.mxu0 %v713
  %944 = vmatpush.bf16.msra.mxu0 %v711
  %945 = vmatpush.bf16.msra.mxu0 %v709
  %946 = vmatpush.bf16.msra.mxu0 %v707
  %947 = vmatpush.bf16.msra.mxu0 %v705
  %948 = vmatpush.bf16.msra.mxu0 %v703
  %949 = vmatpush.bf16.msra.mxu0 %v701
  %950 = vmatpush.bf16.msra.mxu0 %v699
  %951 = vmatmul.bf16.gmra.mxu0 %v209
  %v952 = vpop.f32.mrf.mxu0
  %v953 = vadd.f32 %v939, %v952
  %v954 = vpop.f32.mrf.mxu0
  %v955 = vadd.f32 %v941, %v954
  %956 = vdwg.mxu0
  %957 = vmatpush.bf16.msra.mxu0 %v729
  %958 = vmatpush.bf16.msra.mxu0 %v727
  %959 = vmatpush.bf16.msra.mxu0 %v725
  %960 = vmatpush.bf16.msra.mxu0 %v723
  %961 = vmatpush.bf16.msra.mxu0 %v721
  %962 = vmatpush.bf16.msra.mxu0 %v719
  %963 = vmatpush.bf16.msra.mxu0 %v717
  %964 = vmatpush.bf16.msra.mxu0 %v715
  %965 = vmatmul.bf16.gmra.mxu0 %v210
  %v966 = vpop.f32.mrf.mxu0
  %v967 = vadd.f32 %v953, %v966
  %v968 = vpop.f32.mrf.mxu0
  %v969 = vadd.f32 %v955, %v968
  %970 = vdwg.mxu0
  %971 = vmatpush.bf16.msra.mxu0 %v618
  %972 = vmatpush.bf16.msra.mxu0 %v616
  %973 = vmatpush.bf16.msra.mxu0 %v614
  %974 = vmatpush.bf16.msra.mxu0 %v612
  %975 = vmatpush.bf16.msra.mxu0 %v610
  %976 = vmatpush.bf16.msra.mxu0 %v608
  %977 = vmatpush.bf16.msra.mxu0 %v606
  %978 = vmatpush.bf16.msra.mxu0 %v604
  %979 = vmatmul.bf16.gmra.mxu0 %v203
  %v980 = vpop.f32.mrf.mxu0
  %v981 = vadd.f32 %v176, %v980
  %v982 = vpop.f32.mrf.mxu0
  %v983 = vadd.f32 %v176, %v982
  %984 = vdwg.mxu0
  %985 = vmatpush.bf16.msra.mxu0 %v634
  %986 = vmatpush.bf16.msra.mxu0 %v632
  %987 = vmatpush.bf16.msra.mxu0 %v630
  %988 = vmatpush.bf16.msra.mxu0 %v628
  %989 = vmatpush.bf16.msra.mxu0 %v626
  %990 = vmatpush.bf16.msra.mxu0 %v624
  %991 = vmatpush.bf16.msra.mxu0 %v622
  %992 = vmatpush.bf16.msra.mxu0 %v620
  %993 = vmatmul.bf16.gmra.mxu0 %v204
  %v994 = vpop.f32.mrf.mxu0
  %v995 = vadd.f32 %v981, %v994
  %v996 = vpop.f32.mrf.mxu0
  %v997 = vadd.f32 %v983, %v996
  %998 = vdwg.mxu0
  %999 = vmatpush.bf16.msra.mxu0 %v650
  %1000 = vmatpush.bf16.msra.mxu0 %v648
  %1001 = vmatpush.bf16.msra.mxu0 %v646
  %1002 = vmatpush.bf16.msra.mxu0 %v644
  %1003 = vmatpush.bf16.msra.mxu0 %v642
  %1004 = vmatpush.bf16.msra.mxu0 %v640
  %1005 = vmatpush.bf16.msra.mxu0 %v638
  %1006 = vmatpush.bf16.msra.mxu0 %v636
  %1007 = vmatmul.bf16.gmra.mxu0 %v205
  %v1008 = vpop.f32.mrf.mxu0
  %v1009 = vadd.f32 %v995, %v1008
  %v1010 = vpop.f32.mrf.mxu0
  %v1011 = vadd.f32 %v997, %v1010
  %1012 = vdwg.mxu0
  %1013 = vmatpush.bf16.msra.mxu0 %v666
  %1014 = vmatpush.bf16.msra.mxu0 %v664
  %1015 = vmatpush.bf16.msra.mxu0 %v662
  %1016 = vmatpush.bf16.msra.mxu0 %v660
  %1017 = vmatpush.bf16.msra.mxu0 %v658
  %1018 = vmatpush.bf16.msra.mxu0 %v656
  %1019 = vmatpush.bf16.msra.mxu0 %v654
  %1020 = vmatpush.bf16.msra.mxu0 %v652
  %1021 = vmatmul.bf16.gmra.mxu0 %v206
  %v1022 = vpop.f32.mrf.mxu0
  %v1023 = vadd.f32 %v1009, %v1022
  %v1024 = vpop.f32.mrf.mxu0
  %v1025 = vadd.f32 %v1011, %v1024
  %1026 = vdwg.mxu0
  %1027 = vmatpush.bf16.msra.mxu0 %v682
  %1028 = vmatpush.bf16.msra.mxu0 %v680
  %1029 = vmatpush.bf16.msra.mxu0 %v678
  %1030 = vmatpush.bf16.msra.mxu0 %v676
  %1031 = vmatpush.bf16.msra.mxu0 %v674
  %1032 = vmatpush.bf16.msra.mxu0 %v672
  %1033 = vmatpush.bf16.msra.mxu0 %v670
  %1034 = vmatpush.bf16.msra.mxu0 %v668
  %1035 = vmatmul.bf16.gmra.mxu0 %v207
  %v1036 = vpop.f32.mrf.mxu0
  %v1037 = vadd.f32 %v1023, %v1036
  %v1038 = vpop.f32.mrf.mxu0
  %v1039 = vadd.f32 %v1025, %v1038
  %1040 = vdwg.mxu0
  %1041 = vmatpush.bf16.msra.mxu0 %v698
  %1042 = vmatpush.bf16.msra.mxu0 %v696
  %1043 = vmatpush.bf16.msra.mxu0 %v694
  %1044 = vmatpush.bf16.msra.mxu0 %v692
  %1045 = vmatpush.bf16.msra.mxu0 %v690
  %1046 = vmatpush.bf16.msra.mxu0 %v688
  %1047 = vmatpush.bf16.msra.mxu0 %v686
  %1048 = vmatpush.bf16.msra.mxu0 %v684
  %1049 = vmatmul.bf16.gmra.mxu0 %v208
  %v1050 = vpop.f32.mrf.mxu0
  %v1051 = vadd.f32 %v1037, %v1050
  %v1052 = vpop.f32.mrf.mxu0
  %v1053 = vadd.f32 %v1039, %v1052
  %1054 = vdwg.mxu0
  %1055 = vmatpush.bf16.msra.mxu0 %v714
  %1056 = vmatpush.bf16.msra.mxu0 %v712
  %1057 = vmatpush.bf16.msra.mxu0 %v710
  %1058 = vmatpush.bf16.msra.mxu0 %v708
  %1059 = vmatpush.bf16.msra.mxu0 %v706
  %1060 = vmatpush.bf16.msra.mxu0 %v704
  %1061 = vmatpush.bf16.msra.mxu0 %v702
  %1062 = vmatpush.bf16.msra.mxu0 %v700
  %1063 = vmatmul.bf16.gmra.mxu0 %v209
  %v1064 = vpop.f32.mrf.mxu0
  %v1065 = vadd.f32 %v1051, %v1064
  %v1066 = vpop.f32.mrf.mxu0
  %v1067 = vadd.f32 %v1053, %v1066
  %1068 = vdwg.mxu0
  %1069 = vmatpush.bf16.msra.mxu0 %v730
  %1070 = vmatpush.bf16.msra.mxu0 %v728
  %1071 = vmatpush.bf16.msra.mxu0 %v726
  %1072 = vmatpush.bf16.msra.mxu0 %v724
  %1073 = vmatpush.bf16.msra.mxu0 %v722
  %1074 = vmatpush.bf16.msra.mxu0 %v720
  %1075 = vmatpush.bf16.msra.mxu0 %v718
  %1076 = vmatpush.bf16.msra.mxu0 %v716
  %1077 = vmatmul.bf16.gmra.mxu0 %v210
  %v1078 = vpop.f32.mrf.mxu0
  %v1079 = vadd.f32 %v1065, %v1078
  %v1080 = vpop.f32.mrf.mxu0
  %v1081 = vadd.f32 %v1067, %v1080
  %1082 = vdwg.mxu0
  %v1083 = vmax.f32 %v967, 0.0
  %v1084 = vmax.f32 %v1079, 0.0
  %v1085 = vmax.f32 %v969, 0.0
  %v1086 = vmax.f32 %v1081, 0.0
  %v1087 = vpack.c.bf16 %v1085, %v1083
  %v1088 = vpack.c.bf16 %v1086, %v1084
  %v1089 = vld [vmem:[%s4] sm:$0xff]
  %v1090 = vld [vmem:[%s4 + $0x8] sm:$0xff]
  %v1091 = vld [vmem:[%s4 + $0x10] sm:$0xff]
  %v1092 = vld [vmem:[%s4 + $0x18] sm:$0xff]
  %v1093 = vld [vmem:[%s4 + $0x20] sm:$0xff]
  %v1094 = vld [vmem:[%s4 + $0x28] sm:$0xff]
  %v1095 = vld [vmem:[%s4 + $0x30] sm:$0xff]
  %v1096 = vld [vmem:[%s4 + $0x38] sm:$0xff]
  %v1097 = vld [vmem:[%s4 + $0x40] sm:$0xff]
  %v1098 = vld [vmem:[%s4 + $0x48] sm:$0xff]
  %v1099 = vld [vmem:[%s4 + $0x50] sm:$0xff]
  %v1100 = vld [vmem:[%s4 + $0x58] sm:$0xff]
  %v1101 = vld [vmem:[%s4 + $0x60] sm:$0xff]
  %v1102 = vld [vmem:[%s4 + $0x68] sm:$0xff]
  %v1103 = vld [vmem:[%s4 + $0x70] sm:$0xff]
  %v1104 = vld [vmem:[%s4 + $0x78] sm:$0xff]
  %v1105 = vld [vmem:[%s4 + $0x80] sm:$0xff]
  %v1106 = vld [vmem:[%s4 + $0x88] sm:$0xff]
  %v1107 = vld [vmem:[%s4 + $0x90] sm:$0xff]
  %v1108 = vld [vmem:[%s4 + $0x98] sm:$0xff]
  %v1109 = vld [vmem:[%s4 + $0xa0] sm:$0xff]
  %v1110 = vld [vmem:[%s4 + $0xa8] sm:$0xff]
  %v1111 = vld [vmem:[%s4 + $0xb0] sm:$0xff]
  %v1112 = vld [vmem:[%s4 + $0xb8] sm:$0xff]
  %v1113 = vld [vmem:[%s4 + $0xc0] sm:$0xff]
  %v1114 = vld [vmem:[%s4 + $0xc8] sm:$0xff]
  %v1115 = vld [vmem:[%s4 + $0xd0] sm:$0xff]
  %v1116 = vld [vmem:[%s4 + $0xd8] sm:$0xff]
  %v1117 = vld [vmem:[%s4 + $0xe0] sm:$0xff]
  %v1118 = vld [vmem:[%s4 + $0xe8] sm:$0xff]
  %v1119 = vld [vmem:[%s4 + $0xf0] sm:$0xff]
  %v1120 = vld [vmem:[%s4 + $0xf8] sm:$0xff]
  %v1121 = vld [vmem:[%s4 + $0x100] sm:$0xff]
  %v1122 = vld [vmem:[%s4 + $0x108] sm:$0xff]
  %v1123 = vld [vmem:[%s4 + $0x110] sm:$0xff]
  %v1124 = vld [vmem:[%s4 + $0x118] sm:$0xff]
  %v1125 = vld [vmem:[%s4 + $0x120] sm:$0xff]
  %v1126 = vld [vmem:[%s4 + $0x128] sm:$0xff]
  %v1127 = vld [vmem:[%s4 + $0x130] sm:$0xff]
  %v1128 = vld [vmem:[%s4 + $0x138] sm:$0xff]
  %v1129 = vld [vmem:[%s4 + $0x140] sm:$0xff]
  %v1130 = vld [vmem:[%s4 + $0x148] sm:$0xff]
  %v1131 = vld [vmem:[%s4 + $0x150] sm:$0xff]
  %v1132 = vld [vmem:[%s4 + $0x158] sm:$0xff]
  %v1133 = vld [vmem:[%s4 + $0x160] sm:$0xff]
  %v1134 = vld [vmem:[%s4 + $0x168] sm:$0xff]
  %v1135 = vld [vmem:[%s4 + $0x170] sm:$0xff]
  %v1136 = vld [vmem:[%s4 + $0x178] sm:$0xff]
  %v1137 = vld [vmem:[%s4 + $0x180] sm:$0xff]
  %v1138 = vld [vmem:[%s4 + $0x188] sm:$0xff]
  %v1139 = vld [vmem:[%s4 + $0x190] sm:$0xff]
  %v1140 = vld [vmem:[%s4 + $0x198] sm:$0xff]
  %v1141 = vld [vmem:[%s4 + $0x1a0] sm:$0xff]
  %v1142 = vld [vmem:[%s4 + $0x1a8] sm:$0xff]
  %v1143 = vld [vmem:[%s4 + $0x1b0] sm:$0xff]
  %v1144 = vld [vmem:[%s4 + $0x1b8] sm:$0xff]
  %v1145 = vld [vmem:[%s4 + $0x1c0] sm:$0xff]
  %v1146 = vld [vmem:[%s4 + $0x1c8] sm:$0xff]
  %v1147 = vld [vmem:[%s4 + $0x1d0] sm:$0xff]
  %v1148 = vld [vmem:[%s4 + $0x1d8] sm:$0xff]
  %v1149 = vld [vmem:[%s4 + $0x1e0] sm:$0xff]
  %v1150 = vld [vmem:[%s4 + $0x1e8] sm:$0xff]
  %v1151 = vld [vmem:[%s4 + $0x1f0] sm:$0xff]
  %v1152 = vld [vmem:[%s4 + $0x1f8] sm:$0xff]
  %v1153 = vld [vmem:[%s5] sm:$0xf]
  %v1155 = vperm.slane %v1153, 0
  %v1156 = vperm.slane %v1153, 1
  %v1157 = vperm.slane %v1153, 2
  %v1158 = vperm.slane %v1153, 3
  %v1227 = vunpack.c.l.b16 %v1089
  %v1228 = vunpack.c.h.b16 %v1089
  %v1229 = vunpack.c.l.b16 %v1090
  %v1230 = vunpack.c.h.b16 %v1090
  %v1231 = vunpack.c.l.b16 %v1091
  %v1232 = vunpack.c.h.b16 %v1091
  %v1233 = vunpack.c.l.b16 %v1092
  %v1234 = vunpack.c.h.b16 %v1092
  %v1235 = vunpack.c.l.b16 %v1093
  %v1236 = vunpack.c.h.b16 %v1093
  %v1237 = vunpack.c.l.b16 %v1094
  %v1238 = vunpack.c.h.b16 %v1094
  %v1239 = vunpack.c.l.b16 %v1095
  %v1240 = vunpack.c.h.b16 %v1095
  %v1241 = vunpack.c.l.b16 %v1096
  %v1242 = vunpack.c.h.b16 %v1096
  %v1243 = vunpack.c.l.b16 %v1097
  %v1244 = vunpack.c.h.b16 %v1097
  %v1245 = vunpack.c.l.b16 %v1098
  %v1246 = vunpack.c.h.b16 %v1098
  %v1247 = vunpack.c.l.b16 %v1099
  %v1248 = vunpack.c.h.b16 %v1099
  %v1249 = vunpack.c.l.b16 %v1100
  %v1250 = vunpack.c.h.b16 %v1100
  %v1251 = vunpack.c.l.b16 %v1101
  %v1252 = vunpack.c.h.b16 %v1101
  %v1253 = vunpack.c.l.b16 %v1102
  %v1254 = vunpack.c.h.b16 %v1102
  %v1255 = vunpack.c.l.b16 %v1103
  %v1256 = vunpack.c.h.b16 %v1103
  %v1257 = vunpack.c.l.b16 %v1104
  %v1258 = vunpack.c.h.b16 %v1104
  %v1259 = vunpack.c.l.b16 %v1105
  %v1260 = vunpack.c.h.b16 %v1105
  %v1261 = vunpack.c.l.b16 %v1106
  %v1262 = vunpack.c.h.b16 %v1106
  %v1263 = vunpack.c.l.b16 %v1107
  %v1264 = vunpack.c.h.b16 %v1107
  %v1265 = vunpack.c.l.b16 %v1108
  %v1266 = vunpack.c.h.b16 %v1108
  %v1267 = vunpack.c.l.b16 %v1109
  %v1268 = vunpack.c.h.b16 %v1109
  %v1269 = vunpack.c.l.b16 %v1110
  %v1270 = vunpack.c.h.b16 %v1110
  %v1271 = vunpack.c.l.b16 %v1111
  %v1272 = vunpack.c.h.b16 %v1111
  %v1273 = vunpack.c.l.b16 %v1112
  %v1274 = vunpack.c.h.b16 %v1112
  %v1275 = vunpack.c.l.b16 %v1113
  %v1276 = vunpack.c.h.b16 %v1113
  %v1277 = vunpack.c.l.b16 %v1114
  %v1278 = vunpack.c.h.b16 %v1114
  %v1279 = vunpack.c.l.b16 %v1115
  %v1280 = vunpack.c.h.b16 %v1115
  %v1281 = vunpack.c.l.b16 %v1116
  %v1282 = vunpack.c.h.b16 %v1116
  %v1283 = vunpack.c.l.b16 %v1117
  %v1284 = vunpack.c.h.b16 %v1117
  %v1285 = vunpack.c.l.b16 %v1118
  %v1286 = vunpack.c.h.b16 %v1118
  %v1287 = vunpack.c.l.b16 %v1119
  %v1288 = vunpack.c.h.b16 %v1119
  %v1289 = vunpack.c.l.b16 %v1120
  %v1290 = vunpack.c.h.b16 %v1120
  %v1291 = vunpack.c.l.b16 %v1121
  %v1292 = vunpack.c.h.b16 %v1121
  %v1293 = vunpack.c.l.b16 %v1122
  %v1294 = vunpack.c.h.b16 %v1122
  %v1295 = vunpack.c.l.b16 %v1123
  %v1296 = vunpack.c.h.b16 %v1123
  %v1297 = vunpack.c.l.b16 %v1124
  %v1298 = vunpack.c.h.b16 %v1124
  %v1299 = vunpack.c.l.b16 %v1125
  %v1300 = vunpack.c.h.b16 %v1125
  %v1301 = vunpack.c.l.b16 %v1126
  %v1302 = vunpack.c.h.b16 %v1126
  %v1303 = vunpack.c.l.b16 %v1127
  %v1304 = vunpack.c.h.b16 %v1127
  %v1305 = vunpack.c.l.b16 %v1128
  %v1306 = vunpack.c.h.b16 %v1128
  %v1307 = vunpack.c.l.b16 %v1129
  %v1308 = vunpack.c.h.b16 %v1129
  %v1309 = vunpack.c.l.b16 %v1130
  %v1310 = vunpack.c.h.b16 %v1130
  %v1311 = vunpack.c.l.b16 %v1131
  %v1312 = vunpack.c.h.b16 %v1131
  %v1313 = vunpack.c.l.b16 %v1132
  %v1314 = vunpack.c.h.b16 %v1132
  %v1315 = vunpack.c.l.b16 %v1133
  %v1316 = vunpack.c.h.b16 %v1133
  %v1317 = vunpack.c.l.b16 %v1134
  %v1318 = vunpack.c.h.b16 %v1134
  %v1319 = vunpack.c.l.b16 %v1135
  %v1320 = vunpack.c.h.b16 %v1135
  %v1321 = vunpack.c.l.b16 %v1136
  %v1322 = vunpack.c.h.b16 %v1136
  %v1323 = vunpack.c.l.b16 %v1137
  %v1324 = vunpack.c.h.b16 %v1137
  %v1325 = vunpack.c.l.b16 %v1138
  %v1326 = vunpack.c.h.b16 %v1138
  %v1327 = vunpack.c.l.b16 %v1139
  %v1328 = vunpack.c.h.b16 %v1139
  %v1329 = vunpack.c.l.b16 %v1140
  %v1330 = vunpack.c.h.b16 %v1140
  %v1331 = vunpack.c.l.b16 %v1141
  %v1332 = vunpack.c.h.b16 %v1141
  %v1333 = vunpack.c.l.b16 %v1142
  %v1334 = vunpack.c.h.b16 %v1142
  %v1335 = vunpack.c.l.b16 %v1143
  %v1336 = vunpack.c.h.b16 %v1143
  %v1337 = vunpack.c.l.b16 %v1144
  %v1338 = vunpack.c.h.b16 %v1144
  %v1339 = vunpack.c.l.b16 %v1145
  %v1340 = vunpack.c.h.b16 %v1145
  %v1341 = vunpack.c.l.b16 %v1146
  %v1342 = vunpack.c.h.b16 %v1146
  %v1343 = vunpack.c.l.b16 %v1147
  %v1344 = vunpack.c.h.b16 %v1147
  %v1345 = vunpack.c.l.b16 %v1148
  %v1346 = vunpack.c.h.b16 %v1148
  %v1347 = vunpack.c.l.b16 %v1149
  %v1348 = vunpack.c.h.b16 %v1149
  %v1349 = vunpack.c.l.b16 %v1150
  %v1350 = vunpack.c.h.b16 %v1150
  %v1351 = vunpack.c.l.b16 %v1151
  %v1352 = vunpack.c.h.b16 %v1151
  %v1353 = vunpack.c.l.b16 %v1152
  %v1354 = vunpack.c.h.b16 %v1152
  %v1355 = vpack.c.b16 %v1231, %v1227
  %v1356 = vpack.c.b16 %v1232, %v1228
  %v1357 = vpack.c.b16 %v1233, %v1229
  %v1358 = vpack.c.b16 %v1234, %v1230
  %v1359 = vpack.c.b16 %v1239, %v1235
  %v1360 = vpack.c.b16 %v1240, %v1236
  %v1361 = vpack.c.b16 %v1241, %v1237
  %v1362 = vpack.c.b16 %v1242, %v1238
  %v1363 = vpack.c.b16 %v1247, %v1243
  %v1364 = vpack.c.b16 %v1248, %v1244
  %v1365 = vpack.c.b16 %v1249, %v1245
  %v1366 = vpack.c.b16 %v1250, %v1246
  %v1367 = vpack.c.b16 %v1255, %v1251
  %v1368 = vpack.c.b16 %v1256, %v1252
  %v1369 = vpack.c.b16 %v1257, %v1253
  %v1370 = vpack.c.b16 %v1258, %v1254
  %v1371 = vpack.c.b16 %v1263, %v1259
  %v1372 = vpack.c.b16 %v1264, %v1260
  %v1373 = vpack.c.b16 %v1265, %v1261
  %v1374 = vpack.c.b16 %v1266, %v1262
  %v1375 = vpack.c.b16 %v1271, %v1267
  %v1376 = vpack.c.b16 %v1272, %v1268
  %v1377 = vpack.c.b16 %v1273, %v1269
  %v1378 = vpack.c.b16 %v1274, %v1270
  %v1379 = vpack.c.b16 %v1279, %v1275
  %v1380 = vpack.c.b16 %v1280, %v1276
  %v1381 = vpack.c.b16 %v1281, %v1277
  %v1382 = vpack.c.b16 %v1282, %v1278
  %v1383 = vpack.c.b16 %v1287, %v1283
  %v1384 = vpack.c.b16 %v1288, %v1284
  %v1385 = vpack.c.b16 %v1289, %v1285
  %v1386 = vpack.c.b16 %v1290, %v1286
  %v1387 = vpack.c.b16 %v1295, %v1291
  %v1388 = vpack.c.b16 %v1296, %v1292
  %v1389 = vpack.c.b16 %v1297, %v1293
  %v1390 = vpack.c.b16 %v1298, %v1294
  %v1391 = vpack.c.b16 %v1303, %v1299
  %v1392 = vpack.c.b16 %v1304, %v1300
  %v1393 = vpack.c.b16 %v1305, %v1301
  %v1394 = vpack.c.b16 %v1306, %v1302
  %v1395 = vpack.c.b16 %v1311, %v1307
  %v1396 = vpack.c.b16 %v1312, %v1308
  %v1397 = vpack.c.b16 %v1313, %v1309
  %v1398 = vpack.c.b16 %v1314, %v1310
  %v1399 = vpack.c.b16 %v1319, %v1315
  %v1400 = vpack.c.b16 %v1320, %v1316
  %v1401 = vpack.c.b16 %v1321, %v1317
  %v1402 = vpack.c.b16 %v1322, %v1318
  %v1403 = vpack.c.b16 %v1327, %v1323
  %v1404 = vpack.c.b16 %v1328, %v1324
  %v1405 = vpack.c.b16 %v1329, %v1325
  %v1406 = vpack.c.b16 %v1330, %v1326
  %v1407 = vpack.c.b16 %v1335, %v1331
  %v1408 = vpack.c.b16 %v1336, %v1332
  %v1409 = vpack.c.b16 %v1337, %v1333
  %v1410 = vpack.c.b16 %v1338, %v1334
  %v1411 = vpack.c.b16 %v1343, %v1339
  %v1412 = vpack.c.b16 %v1344, %v1340
  %v1413 = vpack.c.b16 %v1345, %v1341
  %v1414 = vpack.c.b16 %v1346, %v1342
  %v1415 = vpack.c.b16 %v1351, %v1347
  %v1416 = vpack.c.b16 %v1352, %v1348
  %v1417 = vpack.c.b16 %v1353, %v1349
  %v1418 = vpack.c.b16 %v1354, %v1350
  %1483 = vmatpush.bf16.msra.mxu0 %v1383
  %1484 = vmatpush.bf16.msra.mxu0 %v1379
  %1485 = vmatpush.bf16.msra.mxu0 %v1375
  %1486 = vmatpush.bf16.msra.mxu0 %v1371
  %1487 = vmatpush.bf16.msra.mxu0 %v1367
  %1488 = vmatpush.bf16.msra.mxu0 %v1363
  %1489 = vmatpush.bf16.msra.mxu0 %v1359
  %1490 = vmatpush.bf16.msra.mxu0 %v1355
  %1491 = vmatmul.bf16.gmra.mxu0 %v1087
  %v1492 = vpop.f32.mrf.mxu0
  %v1493 = vadd.f32 %v1155, %v1492
  %v1494 = vpop.f32.mrf.mxu0
  %v1495 = vadd.f32 %v1155, %v1494
  %1496 = vdwg.mxu0
  %1497 = vmatpush.bf16.msra.mxu0 %v1415
  %1498 = vmatpush.bf16.msra.mxu0 %v1411
  %1499 = vmatpush.bf16.msra.mxu0 %v1407
  %1500 = vmatpush.bf16.msra.mxu0 %v1403
  %1501 = vmatpush.bf16.msra.mxu0 %v1399
  %1502 = vmatpush.bf16.msra.mxu0 %v1395
  %1503 = vmatpush.bf16.msra.mxu0 %v1391
  %1504 = vmatpush.bf16.msra.mxu0 %v1387
  %1505 = vmatmul.bf16.gmra.mxu0 %v1088
  %v1506 = vpop.f32.mrf.mxu0
  %v1507 = vadd.f32 %v1493, %v1506
  %v1508 = vpop.f32.mrf.mxu0
  %v1509 = vadd.f32 %v1495, %v1508
  %1510 = vdwg.mxu0
  %1511 = vmatpush.bf16.msra.mxu0 %v1384
  %1512 = vmatpush.bf16.msra.mxu0 %v1380
  %1513 = vmatpush.bf16.msra.mxu0 %v1376
  %1514 = vmatpush.bf16.msra.mxu0 %v1372
  %1515 = vmatpush.bf16.msra.mxu0 %v1368
  %1516 = vmatpush.bf16.msra.mxu0 %v1364
  %1517 = vmatpush.bf16.msra.mxu0 %v1360
  %1518 = vmatpush.bf16.msra.mxu0 %v1356
  %1519 = vmatmul.bf16.gmra.mxu0 %v1087
  %v1520 = vpop.f32.mrf.mxu0
  %v1521 = vadd.f32 %v1156, %v1520
  %v1522 = vpop.f32.mrf.mxu0
  %v1523 = vadd.f32 %v1156, %v1522
  %1524 = vdwg.mxu0
  %1525 = vmatpush.bf16.msra.mxu0 %v1416
  %1526 = vmatpush.bf16.msra.mxu0 %v1412
  %1527 = vmatpush.bf16.msra.mxu0 %v1408
  %1528 = vmatpush.bf16.msra.mxu0 %v1404
  %1529 = vmatpush.bf16.msra.mxu0 %v1400
  %1530 = vmatpush.bf16.msra.mxu0 %v1396
  %1531 = vmatpush.bf16.msra.mxu0 %v1392
  %1532 = vmatpush.bf16.msra.mxu0 %v1388
  %1533 = vmatmul.bf16.gmra.mxu0 %v1088
  %v1534 = vpop.f32.mrf.mxu0
  %v1535 = vadd.f32 %v1521, %v1534
  %v1536 = vpop.f32.mrf.mxu0
  %v1537 = vadd.f32 %v1523, %v1536
  %1538 = vdwg.mxu0
  %1539 = vmatpush.bf16.msra.mxu0 %v1385
  %1540 = vmatpush.bf16.msra.mxu0 %v1381
  %1541 = vmatpush.bf16.msra.mxu0 %v1377
  %1542 = vmatpush.bf16.msra.mxu0 %v1373
  %1543 = vmatpush.bf16.msra.mxu0 %v1369
  %1544 = vmatpush.bf16.msra.mxu0 %v1365
  %1545 = vmatpush.bf16.msra.mxu0 %v1361
  %1546 = vmatpush.bf16.msra.mxu0 %v1357
  %1547 = vmatmul.bf16.gmra.mxu0 %v1087
  %v1548 = vpop.f32.mrf.mxu0
  %v1549 = vadd.f32 %v1157, %v1548
  %v1550 = vpop.f32.mrf.mxu0
  %v1551 = vadd.f32 %v1157, %v1550
  %1552 = vdwg.mxu0
  %1553 = vmatpush.bf16.msra.mxu0 %v1417
  %1554 = vmatpush.bf16.msra.mxu0 %v1413
  %1555 = vmatpush.bf16.msra.mxu0 %v1409
  %1556 = vmatpush.bf16.msra.mxu0 %v1405
  %1557 = vmatpush.bf16.msra.mxu0 %v1401
  %1558 = vmatpush.bf16.msra.mxu0 %v1397
  %1559 = vmatpush.bf16.msra.mxu0 %v1393
  %1560 = vmatpush.bf16.msra.mxu0 %v1389
  %1561 = vmatmul.bf16.gmra.mxu0 %v1088
  %v1562 = vpop.f32.mrf.mxu0
  %v1563 = vadd.f32 %v1549, %v1562
  %v1564 = vpop.f32.mrf.mxu0
  %v1565 = vadd.f32 %v1551, %v1564
  %1566 = vdwg.mxu0
  %1567 = vmatpush.bf16.msra.mxu0 %v1386
  %1568 = vmatpush.bf16.msra.mxu0 %v1382
  %1569 = vmatpush.bf16.msra.mxu0 %v1378
  %1570 = vmatpush.bf16.msra.mxu0 %v1374
  %1571 = vmatpush.bf16.msra.mxu0 %v1370
  %1572 = vmatpush.bf16.msra.mxu0 %v1366
  %1573 = vmatpush.bf16.msra.mxu0 %v1362
  %1574 = vmatpush.bf16.msra.mxu0 %v1358
  %1575 = vmatmul.bf16.gmra.mxu0 %v1087
  %v1576 = vpop.f32.mrf.mxu0
  %v1577 = vadd.f32 %v1158, %v1576
  %v1578 = vpop.f32.mrf.mxu0
  %v1579 = vadd.f32 %v1158, %v1578
  %1580 = vdwg.mxu0
  %1581 = vmatpush.bf16.msra.mxu0 %v1418
  %1582 = vmatpush.bf16.msra.mxu0 %v1414
  %1583 = vmatpush.bf16.msra.mxu0 %v1410
  %1584 = vmatpush.bf16.msra.mxu0 %v1406
  %1585 = vmatpush.bf16.msra.mxu0 %v1402
  %1586 = vmatpush.bf16.msra.mxu0 %v1398
  %1587 = vmatpush.bf16.msra.mxu0 %v1394
  %1588 = vmatpush.bf16.msra.mxu0 %v1390
  %1589 = vmatmul.bf16.gmra.mxu0 %v1088
  %v1590 = vpop.f32.mrf.mxu0
  %v1591 = vadd.f32 %v1577, %v1590
  %v1592 = vpop.f32.mrf.mxu0
  %v1593 = vadd.f32 %v1579, %v1592
  %1594 = vdwg.mxu0
  %v1595 = vmul.f32 %v1563, 0.5
  %v1596 = vmul.f32 %v1591, 0.5
  %v1597 = vmul.f32 %v1565, 0.5
  %v1598 = vmul.f32 %v1593, 0.5
  %v1599 = vmul.f32 %v1595, 1.442695
  %v1600 = vpow.pop %v1599
  %v1601 = vmul.f32 %v1596, 1.442695
  %v1602 = vpow.pop %v1601
  %v1603 = vmul.f32 %v1597, 1.442695
  %v1604 = vpow.pop %v1603
  %v1605 = vmul.f32 %v1598, 1.442695
  %v1606 = vpow.pop %v1605
  %v1607 = vld [vmem:[%s1] sm:$0xff]
  %v1608 = vld [vmem:[%s1 + $0x8] sm:$0xff]
  %v1609 = vld [vmem:[%s1 + $0x10] sm:$0xff]
  %v1610 = vld [vmem:[%s1 + $0x18] sm:$0xff]
  %v1611 = vmul.f32 %v1607, %v1600
  %v1612 = vmul.f32 %v1608, %v1602
  %v1613 = vmul.f32 %v1609, %v1604
  %v1614 = vmul.f32 %v1610, %v1606
  %v1615 = vadd.f32 %v1507, %v1611
  %v1616 = vadd.f32 %v1535, %v1612
  %v1617 = vadd.f32 %v1509, %v1613
  %v1618 = vadd.f32 %v1537, %v1614
  %1619 = vst [vmem:[%s10] sm:$0xff] %v1507
  %1620 = vst [vmem:[%s10 + $0x8] sm:$0xff] %v1535
  %1621 = vst [vmem:[%s10 + $0x30] sm:$0xff] %v1509
  %1622 = vst [vmem:[%s10 + $0x38] sm:$0xff] %v1537
  %1623 = vst [vmem:[%s10 + $0x10] sm:$0xff] %v1563
  %1624 = vst [vmem:[%s10 + $0x18] sm:$0xff] %v1591
  %1625 = vst [vmem:[%s10 + $0x40] sm:$0xff] %v1565
  %1626 = vst [vmem:[%s10 + $0x48] sm:$0xff] %v1593
  %1627 = vst [vmem:[%s10 + $0x20] sm:$0xff] %v1615
  %1628 = vst [vmem:[%s10 + $0x28] sm:$0xff] %v1616
  %1629 = vst [vmem:[%s10 + $0x50] sm:$0xff] %v1617
  %1630 = vst [vmem:[%s10 + $0x58] sm:$0xff] %v1618
  %v1631 = vpack.c.bf16 %v1617, %v1615
  %v1632 = vpack.c.bf16 %v1618, %v1616
  %v1633 = vld [vmem:[%s6] sm:$0xff]
  %v1634 = vld [vmem:[%s6 + $0x8] sm:$0xff]
  %v1635 = vld [vmem:[%s6 + $0x10] sm:$0xff]
  %v1636 = vld [vmem:[%s6 + $0x18] sm:$0xff]
  %v1637 = vld [vmem:[%s6 + $0x20] sm:$0xff]
  %v1638 = vld [vmem:[%s6 + $0x28] sm:$0xff]
  %v1639 = vld [vmem:[%s6 + $0x30] sm:$0xff]
  %v1640 = vld [vmem:[%s6 + $0x38] sm:$0xff]
  %v1641 = vld [vmem:[%s6 + $0x40] sm:$0xff]
  %v1642 = vld [vmem:[%s6 + $0x48] sm:$0xff]
  %v1643 = vld [vmem:[%s6 + $0x50] sm:$0xff]
  %v1644 = vld [vmem:[%s6 + $0x58] sm:$0xff]
  %v1645 = vld [vmem:[%s6 + $0x60] sm:$0xff]
  %v1646 = vld [vmem:[%s6 + $0x68] sm:$0xff]
  %v1647 = vld [vmem:[%s6 + $0x70] sm:$0xff]
  %v1648 = vld [vmem:[%s6 + $0x78] sm:$0xff]
  %v1649 = vld [vmem:[%s6 + $0x80] sm:$0xff]
  %v1650 = vld [vmem:[%s6 + $0x88] sm:$0xff]
  %v1651 = vld [vmem:[%s6 + $0x90] sm:$0xff]
  %v1652 = vld [vmem:[%s6 + $0x98] sm:$0xff]
  %v1653 = vld [vmem:[%s6 + $0xa0] sm:$0xff]
  %v1654 = vld [vmem:[%s6 + $0xa8] sm:$0xff]
  %v1655 = vld [vmem:[%s6 + $0xb0] sm:$0xff]
  %v1656 = vld [vmem:[%s6 + $0xb8] sm:$0xff]
  %v1657 = vld [vmem:[%s6 + $0xc0] sm:$0xff]
  %v1658 = vld [vmem:[%s6 + $0xc8] sm:$0xff]
  %v1659 = vld [vmem:[%s6 + $0xd0] sm:$0xff]
  %v1660 = vld [vmem:[%s6 + $0xd8] sm:$0xff]
  %v1661 = vld [vmem:[%s6 + $0xe0] sm:$0xff]
  %v1662 = vld [vmem:[%s6 + $0xe8] sm:$0xff]
  %v1663 = vld [vmem:[%s6 + $0xf0] sm:$0xff]
  %v1664 = vld [vmem:[%s6 + $0xf8] sm:$0xff]
  %v1665 = vld [vmem:[%s7] sm:$0x3]
  %v1667 = vperm.slane %v1665, 0
  %v1668 = vperm.slane %v1665, 1
  %v1703 = vunpack.c.l.b16 %v1633
  %v1704 = vunpack.c.h.b16 %v1633
  %v1705 = vunpack.c.l.b16 %v1634
  %v1706 = vunpack.c.h.b16 %v1634
  %v1707 = vunpack.c.l.b16 %v1635
  %v1708 = vunpack.c.h.b16 %v1635
  %v1709 = vunpack.c.l.b16 %v1636
  %v1710 = vunpack.c.h.b16 %v1636
  %v1711 = vunpack.c.l.b16 %v1637
  %v1712 = vunpack.c.h.b16 %v1637
  %v1713 = vunpack.c.l.b16 %v1638
  %v1714 = vunpack.c.h.b16 %v1638
  %v1715 = vunpack.c.l.b16 %v1639
  %v1716 = vunpack.c.h.b16 %v1639
  %v1717 = vunpack.c.l.b16 %v1640
  %v1718 = vunpack.c.h.b16 %v1640
  %v1719 = vunpack.c.l.b16 %v1641
  %v1720 = vunpack.c.h.b16 %v1641
  %v1721 = vunpack.c.l.b16 %v1642
  %v1722 = vunpack.c.h.b16 %v1642
  %v1723 = vunpack.c.l.b16 %v1643
  %v1724 = vunpack.c.h.b16 %v1643
  %v1725 = vunpack.c.l.b16 %v1644
  %v1726 = vunpack.c.h.b16 %v1644
  %v1727 = vunpack.c.l.b16 %v1645
  %v1728 = vunpack.c.h.b16 %v1645
  %v1729 = vunpack.c.l.b16 %v1646
  %v1730 = vunpack.c.h.b16 %v1646
  %v1731 = vunpack.c.l.b16 %v1647
  %v1732 = vunpack.c.h.b16 %v1647
  %v1733 = vunpack.c.l.b16 %v1648
  %v1734 = vunpack.c.h.b16 %v1648
  %v1735 = vunpack.c.l.b16 %v1649
  %v1736 = vunpack.c.h.b16 %v1649
  %v1737 = vunpack.c.l.b16 %v1650
  %v1738 = vunpack.c.h.b16 %v1650
  %v1739 = vunpack.c.l.b16 %v1651
  %v1740 = vunpack.c.h.b16 %v1651
  %v1741 = vunpack.c.l.b16 %v1652
  %v1742 = vunpack.c.h.b16 %v1652
  %v1743 = vunpack.c.l.b16 %v1653
  %v1744 = vunpack.c.h.b16 %v1653
  %v1745 = vunpack.c.l.b16 %v1654
  %v1746 = vunpack.c.h.b16 %v1654
  %v1747 = vunpack.c.l.b16 %v1655
  %v1748 = vunpack.c.h.b16 %v1655
  %v1749 = vunpack.c.l.b16 %v1656
  %v1750 = vunpack.c.h.b16 %v1656
  %v1751 = vunpack.c.l.b16 %v1657
  %v1752 = vunpack.c.h.b16 %v1657
  %v1753 = vunpack.c.l.b16 %v1658
  %v1754 = vunpack.c.h.b16 %v1658
  %v1755 = vunpack.c.l.b16 %v1659
  %v1756 = vunpack.c.h.b16 %v1659
  %v1757 = vunpack.c.l.b16 %v1660
  %v1758 = vunpack.c.h.b16 %v1660
  %v1759 = vunpack.c.l.b16 %v1661
  %v1760 = vunpack.c.h.b16 %v1661
  %v1761 = vunpack.c.l.b16 %v1662
  %v1762 = vunpack.c.h.b16 %v1662
  %v1763 = vunpack.c.l.b16 %v1663
  %v1764 = vunpack.c.h.b16 %v1663
  %v1765 = vunpack.c.l.b16 %v1664
  %v1766 = vunpack.c.h.b16 %v1664
  %v1767 = vpack.c.b16 %v1705, %v1703
  %v1768 = vpack.c.b16 %v1706, %v1704
  %v1769 = vpack.c.b16 %v1709, %v1707
  %v1770 = vpack.c.b16 %v1710, %v1708
  %v1771 = vpack.c.b16 %v1713, %v1711
  %v1772 = vpack.c.b16 %v1714, %v1712
  %v1773 = vpack.c.b16 %v1717, %v1715
  %v1774 = vpack.c.b16 %v1718, %v1716
  %v1775 = vpack.c.b16 %v1721, %v1719
  %v1776 = vpack.c.b16 %v1722, %v1720
  %v1777 = vpack.c.b16 %v1725, %v1723
  %v1778 = vpack.c.b16 %v1726, %v1724
  %v1779 = vpack.c.b16 %v1729, %v1727
  %v1780 = vpack.c.b16 %v1730, %v1728
  %v1781 = vpack.c.b16 %v1733, %v1731
  %v1782 = vpack.c.b16 %v1734, %v1732
  %v1783 = vpack.c.b16 %v1737, %v1735
  %v1784 = vpack.c.b16 %v1738, %v1736
  %v1785 = vpack.c.b16 %v1741, %v1739
  %v1786 = vpack.c.b16 %v1742, %v1740
  %v1787 = vpack.c.b16 %v1745, %v1743
  %v1788 = vpack.c.b16 %v1746, %v1744
  %v1789 = vpack.c.b16 %v1749, %v1747
  %v1790 = vpack.c.b16 %v1750, %v1748
  %v1791 = vpack.c.b16 %v1753, %v1751
  %v1792 = vpack.c.b16 %v1754, %v1752
  %v1793 = vpack.c.b16 %v1757, %v1755
  %v1794 = vpack.c.b16 %v1758, %v1756
  %v1795 = vpack.c.b16 %v1761, %v1759
  %v1796 = vpack.c.b16 %v1762, %v1760
  %v1797 = vpack.c.b16 %v1765, %v1763
  %v1798 = vpack.c.b16 %v1766, %v1764
  %1831 = vmatpush.bf16.msra.mxu0 %v1781
  %1832 = vmatpush.bf16.msra.mxu0 %v1779
  %1833 = vmatpush.bf16.msra.mxu0 %v1777
  %1834 = vmatpush.bf16.msra.mxu0 %v1775
  %1835 = vmatpush.bf16.msra.mxu0 %v1773
  %1836 = vmatpush.bf16.msra.mxu0 %v1771
  %1837 = vmatpush.bf16.msra.mxu0 %v1769
  %1838 = vmatpush.bf16.msra.mxu0 %v1767
  %1839 = vmatmul.bf16.gmra.mxu0 %v1631
  %v1840 = vpop.f32.mrf.mxu0
  %v1841 = vadd.f32 %v1667, %v1840
  %v1842 = vpop.f32.mrf.mxu0
  %v1843 = vadd.f32 %v1667, %v1842
  %1844 = vdwg.mxu0
  %1845 = vmatpush.bf16.msra.mxu0 %v1797
  %1846 = vmatpush.bf16.msra.mxu0 %v1795
  %1847 = vmatpush.bf16.msra.mxu0 %v1793
  %1848 = vmatpush.bf16.msra.mxu0 %v1791
  %1849 = vmatpush.bf16.msra.mxu0 %v1789
  %1850 = vmatpush.bf16.msra.mxu0 %v1787
  %1851 = vmatpush.bf16.msra.mxu0 %v1785
  %1852 = vmatpush.bf16.msra.mxu0 %v1783
  %1853 = vmatmul.bf16.gmra.mxu0 %v1632
  %v1854 = vpop.f32.mrf.mxu0
  %v1855 = vadd.f32 %v1841, %v1854
  %v1856 = vpop.f32.mrf.mxu0
  %v1857 = vadd.f32 %v1843, %v1856
  %1858 = vdwg.mxu0
  %1859 = vmatpush.bf16.msra.mxu0 %v1782
  %1860 = vmatpush.bf16.msra.mxu0 %v1780
  %1861 = vmatpush.bf16.msra.mxu0 %v1778
  %1862 = vmatpush.bf16.msra.mxu0 %v1776
  %1863 = vmatpush.bf16.msra.mxu0 %v1774
  %1864 = vmatpush.bf16.msra.mxu0 %v1772
  %1865 = vmatpush.bf16.msra.mxu0 %v1770
  %1866 = vmatpush.bf16.msra.mxu0 %v1768
  %1867 = vmatmul.bf16.gmra.mxu0 %v1631
  %v1868 = vpop.f32.mrf.mxu0
  %v1869 = vadd.f32 %v1668, %v1868
  %v1870 = vpop.f32.mrf.mxu0
  %v1871 = vadd.f32 %v1668, %v1870
  %1872 = vdwg.mxu0
  %1873 = vmatpush.bf16.msra.mxu0 %v1798
  %1874 = vmatpush.bf16.msra.mxu0 %v1796
  %1875 = vmatpush.bf16.msra.mxu0 %v1794
  %1876 = vmatpush.bf16.msra.mxu0 %v1792
  %1877 = vmatpush.bf16.msra.mxu0 %v1790
  %1878 = vmatpush.bf16.msra.mxu0 %v1788
  %1879 = vmatpush.bf16.msra.mxu0 %v1786
  %1880 = vmatpush.bf16.msra.mxu0 %v1784
  %1881 = vmatmul.bf16.gmra.mxu0 %v1632
  %v1882 = vpop.f32.mrf.mxu0
  %v1883 = vadd.f32 %v1869, %v1882
  %v1884 = vpop.f32.mrf.mxu0
  %v1885 = vadd.f32 %v1871, %v1884
  %1886 = vdwg.mxu0
  %v1887 = vmax.f32 %v1855, 0.0
  %v1888 = vmax.f32 %v1883, 0.0
  %v1889 = vmax.f32 %v1857, 0.0
  %v1890 = vmax.f32 %v1885, 0.0
  %v1891 = vpack.c.bf16 %v1889, %v1887
  %v1892 = vpack.c.bf16 %v1890, %v1888
  %v1893 = vld [vmem:[%s8] sm:$0xff]
  %v1894 = vld [vmem:[%s8 + $0x8] sm:$0xff]
  %v1895 = vld [vmem:[%s8 + $0x10] sm:$0xff]
  %v1896 = vld [vmem:[%s8 + $0x18] sm:$0xff]
  %v1897 = vld [vmem:[%s8 + $0x20] sm:$0xff]
  %v1898 = vld [vmem:[%s8 + $0x28] sm:$0xff]
  %v1899 = vld [vmem:[%s8 + $0x30] sm:$0xff]
  %v1900 = vld [vmem:[%s8 + $0x38] sm:$0xff]
  %v1901 = vld [vmem:[%s8 + $0x40] sm:$0xff]
  %v1902 = vld [vmem:[%s8 + $0x48] sm:$0xff]
  %v1903 = vld [vmem:[%s8 + $0x50] sm:$0xff]
  %v1904 = vld [vmem:[%s8 + $0x58] sm:$0xff]
  %v1905 = vld [vmem:[%s8 + $0x60] sm:$0xff]
  %v1906 = vld [vmem:[%s8 + $0x68] sm:$0xff]
  %v1907 = vld [vmem:[%s8 + $0x70] sm:$0xff]
  %v1908 = vld [vmem:[%s8 + $0x78] sm:$0xff]
  %v1909 = vld [vmem:[%s8 + $0x80] sm:$0xff]
  %v1910 = vld [vmem:[%s8 + $0x88] sm:$0xff]
  %v1911 = vld [vmem:[%s8 + $0x90] sm:$0xff]
  %v1912 = vld [vmem:[%s8 + $0x98] sm:$0xff]
  %v1913 = vld [vmem:[%s8 + $0xa0] sm:$0xff]
  %v1914 = vld [vmem:[%s8 + $0xa8] sm:$0xff]
  %v1915 = vld [vmem:[%s8 + $0xb0] sm:$0xff]
  %v1916 = vld [vmem:[%s8 + $0xb8] sm:$0xff]
  %v1917 = vld [vmem:[%s8 + $0xc0] sm:$0xff]
  %v1918 = vld [vmem:[%s8 + $0xc8] sm:$0xff]
  %v1919 = vld [vmem:[%s8 + $0xd0] sm:$0xff]
  %v1920 = vld [vmem:[%s8 + $0xd8] sm:$0xff]
  %v1921 = vld [vmem:[%s8 + $0xe0] sm:$0xff]
  %v1922 = vld [vmem:[%s8 + $0xe8] sm:$0xff]
  %v1923 = vld [vmem:[%s8 + $0xf0] sm:$0xff]
  %v1924 = vld [vmem:[%s8 + $0xf8] sm:$0xff]
  %v1925 = vld [vmem:[%s8 + $0x100] sm:$0xff]
  %v1926 = vld [vmem:[%s8 + $0x108] sm:$0xff]
  %v1927 = vld [vmem:[%s8 + $0x110] sm:$0xff]
  %v1928 = vld [vmem:[%s8 + $0x118] sm:$0xff]
  %v1929 = vld [vmem:[%s8 + $0x120] sm:$0xff]
  %v1930 = vld [vmem:[%s8 + $0x128] sm:$0xff]
  %v1931 = vld [vmem:[%s8 + $0x130] sm:$0xff]
  %v1932 = vld [vmem:[%s8 + $0x138] sm:$0xff]
  %v1933 = vld [vmem:[%s8 + $0x140] sm:$0xff]
  %v1934 = vld [vmem:[%s8 + $0x148] sm:$0xff]
  %v1935 = vld [vmem:[%s8 + $0x150] sm:$0xff]
  %v1936 = vld [vmem:[%s8 + $0x158] sm:$0xff]
  %v1937 = vld [vmem:[%s8 + $0x160] sm:$0xff]
  %v1938 = vld [vmem:[%s8 + $0x168] sm:$0xff]
  %v1939 = vld [vmem:[%s8 + $0x170] sm:$0xff]
  %v1940 = vld [vmem:[%s8 + $0x178] sm:$0xff]
  %v1941 = vld [vmem:[%s8 + $0x180] sm:$0xff]
  %v1942 = vld [vmem:[%s8 + $0x188] sm:$0xff]
  %v1943 = vld [vmem:[%s8 + $0x190] sm:$0xff]
  %v1944 = vld [vmem:[%s8 + $0x198] sm:$0xff]
  %v1945 = vld [vmem:[%s8 + $0x1a0] sm:$0xff]
  %v1946 = vld [vmem:[%s8 + $0x1a8] sm:$0xff]
  %v1947 = vld [vmem:[%s8 + $0x1b0] sm:$0xff]
  %v1948 = vld [vmem:[%s8 + $0x1b8] sm:$0xff]
  %v1949 = vld [vmem:[%s8 + $0x1c0] sm:$0xff]
  %v1950 = vld [vmem:[%s8 + $0x1c8] sm:$0xff]
  %v1951 = vld [vmem:[%s8 + $0x1d0] sm:$0xff]
  %v1952 = vld [vmem:[%s8 + $0x1d8] sm:$0xff]
  %v1953 = vld [vmem:[%s8 + $0x1e0] sm:$0xff]
  %v1954 = vld [vmem:[%s8 + $0x1e8] sm:$0xff]
  %v1955 = vld [vmem:[%s8 + $0x1f0] sm:$0xff]
  %v1956 = vld [vmem:[%s8 + $0x1f8] sm:$0xff]
  %v1957 = vld [vmem:[%s8 + $0x200] sm:$0xff]
  %v1958 = vld [vmem:[%s8 + $0x208] sm:$0xff]
  %v1959 = vld [vmem:[%s8 + $0x210] sm:$0xff]
  %v1960 = vld [vmem:[%s8 + $0x218] sm:$0xff]
  %v1961 = vld [vmem:[%s8 + $0x220] sm:$0xff]
  %v1962 = vld [vmem:[%s8 + $0x228] sm:$0xff]
  %v1963 = vld [vmem:[%s8 + $0x230] sm:$0xff]
  %v1964 = vld [vmem:[%s8 + $0x238] sm:$0xff]
  %v1965 = vld [vmem:[%s8 + $0x240] sm:$0xff]
  %v1966 = vld [vmem:[%s8 + $0x248] sm:$0xff]
  %v1967 = vld [vmem:[%s8 + $0x250] sm:$0xff]
  %v1968 = vld [vmem:[%s8 + $0x258] sm:$0xff]
  %v1969 = vld [vmem:[%s8 + $0x260] sm:$0xff]
  %v1970 = vld [vmem:[%s8 + $0x268] sm:$0xff]
  %v1971 = vld [vmem:[%s8 + $0x270] sm:$0xff]
  %v1972 = vld [vmem:[%s8 + $0x278] sm:$0xff]
  %v1973 = vld [vmem:[%s8 + $0x280] sm:$0xff]
  %v1974 = vld [vmem:[%s8 + $0x288] sm:$0xff]
  %v1975 = vld [vmem:[%s8 + $0x290] sm:$0xff]
  %v1976 = vld [vmem:[%s8 + $0x298] sm:$0xff]
  %v1977 = vld [vmem:[%s8 + $0x2a0] sm:$0xff]
  %v1978 = vld [vmem:[%s8 + $0x2a8] sm:$0xff]
  %v1979 = vld [vmem:[%s8 + $0x2b0] sm:$0xff]
  %v1980 = vld [vmem:[%s8 + $0x2b8] sm:$0xff]
  %v1981 = vld [vmem:[%s8 + $0x2c0] sm:$0xff]
  %v1982 = vld [vmem:[%s8 + $0x2c8] sm:$0xff]
  %v1983 = vld [vmem:[%s8 + $0x2d0] sm:$0xff]
  %v1984 = vld [vmem:[%s8 + $0x2d8] sm:$0xff]
  %v1985 = vld [vmem:[%s8 + $0x2e0] sm:$0xff]
  %v1986 = vld [vmem:[%s8 + $0x2e8] sm:$0xff]
  %v1987 = vld [vmem:[%s8 + $0x2f0] sm:$0xff]
  %v1988 = vld [vmem:[%s8 + $0x2f8] sm:$0xff]
  %v1989 = vld [vmem:[%s8 + $0x300] sm:$0xff]
  %v1990 = vld [vmem:[%s8 + $0x308] sm:$0xff]
  %v1991 = vld [vmem:[%s8 + $0x310] sm:$0xff]
  %v1992 = vld [vmem:[%s8 + $0x318] sm:$0xff]
  %v1993 = vld [vmem:[%s8 + $0x320] sm:$0xff]
  %v1994 = vld [vmem:[%s8 + $0x328] sm:$0xff]
  %v1995 = vld [vmem:[%s8 + $0x330] sm:$0xff]
  %v1996 = vld [vmem:[%s8 + $0x338] sm:$0xff]
  %v1997 = vld [vmem:[%s8 + $0x340] sm:$0xff]
  %v1998 = vld [vmem:[%s8 + $0x348] sm:$0xff]
  %v1999 = vld [vmem:[%s8 + $0x350] sm:$0xff]
  %v2000 = vld [vmem:[%s8 + $0x358] sm:$0xff]
  %v2001 = vld [vmem:[%s8 + $0x360] sm:$0xff]
  %v2002 = vld [vmem:[%s8 + $0x368] sm:$0xff]
  %v2003 = vld [vmem:[%s8 + $0x370] sm:$0xff]
  %v2004 = vld [vmem:[%s8 + $0x378] sm:$0xff]
  %v2005 = vld [vmem:[%s8 + $0x380] sm:$0xff]
  %v2006 = vld [vmem:[%s8 + $0x388] sm:$0xff]
  %v2007 = vld [vmem:[%s8 + $0x390] sm:$0xff]
  %v2008 = vld [vmem:[%s8 + $0x398] sm:$0xff]
  %v2009 = vld [vmem:[%s8 + $0x3a0] sm:$0xff]
  %v2010 = vld [vmem:[%s8 + $0x3a8] sm:$0xff]
  %v2011 = vld [vmem:[%s8 + $0x3b0] sm:$0xff]
  %v2012 = vld [vmem:[%s8 + $0x3b8] sm:$0xff]
  %v2013 = vld [vmem:[%s8 + $0x3c0] sm:$0xff]
  %v2014 = vld [vmem:[%s8 + $0x3c8] sm:$0xff]
  %v2015 = vld [vmem:[%s8 + $0x3d0] sm:$0xff]
  %v2016 = vld [vmem:[%s8 + $0x3d8] sm:$0xff]
  %v2017 = vld [vmem:[%s8 + $0x3e0] sm:$0xff]
  %v2018 = vld [vmem:[%s8 + $0x3e8] sm:$0xff]
  %v2019 = vld [vmem:[%s8 + $0x3f0] sm:$0xff]
  %v2020 = vld [vmem:[%s8 + $0x3f8] sm:$0xff]
  %v2021 = vld [vmem:[%s9] sm:$0xff]
  %v2023 = vperm.slane %v2021, 0
  %v2024 = vperm.slane %v2021, 1
  %v2025 = vperm.slane %v2021, 2
  %v2026 = vperm.slane %v2021, 3
  %v2027 = vperm.slane %v2021, 4
  %v2028 = vperm.slane %v2021, 5
  %v2029 = vperm.slane %v2021, 6
  %v2030 = vperm.slane %v2021, 7
  %v2167 = vunpack.c.l.b16 %v1893
  %v2168 = vunpack.c.h.b16 %v1893
  %v2169 = vunpack.c.l.b16 %v1894
  %v2170 = vunpack.c.h.b16 %v1894
  %v2171 = vunpack.c.l.b16 %v1895
  %v2172 = vunpack.c.h.b16 %v1895
  %v2173 = vunpack.c.l.b16 %v1896
  %v2174 = vunpack.c.h.b16 %v1896
  %v2175 = vunpack.c.l.b16 %v1897
  %v2176 = vunpack.c.h.b16 %v1897
  %v2177 = vunpack.c.l.b16 %v1898
  %v2178 = vunpack.c.h.b16 %v1898
  %v2179 = vunpack.c.l.b16 %v1899
  %v2180 = vunpack.c.h.b16 %v1899
  %v2181 = vunpack.c.l.b16 %v1900
  %v2182 = vunpack.c.h.b16 %v1900
  %v2183 = vunpack.c.l.b16 %v1901
  %v2184 = vunpack.c.h.b16 %v1901
  %v2185 = vunpack.c.l.b16 %v1902
  %v2186 = vunpack.c.h.b16 %v1902
  %v2187 = vunpack.c.l.b16 %v1903
  %v2188 = vunpack.c.h.b16 %v1903
  %v2189 = vunpack.c.l.b16 %v1904
  %v2190 = vunpack.c.h.b16 %v1904
  %v2191 = vunpack.c.l.b16 %v1905
  %v2192 = vunpack.c.h.b16 %v1905
  %v2193 = vunpack.c.l.b16 %v1906
  %v2194 = vunpack.c.h.b16 %v1906
  %v2195 = vunpack.c.l.b16 %v1907
  %v2196 = vunpack.c.h.b16 %v1907
  %v2197 = vunpack.c.l.b16 %v1908
  %v2198 = vunpack.c.h.b16 %v1908
  %v2199 = vunpack.c.l.b16 %v1909
  %v2200 = vunpack.c.h.b16 %v1909
  %v2201 = vunpack.c.l.b16 %v1910
  %v2202 = vunpack.c.h.b16 %v1910
  %v2203 = vunpack.c.l.b16 %v1911
  %v2204 = vunpack.c.h.b16 %v1911
  %v2205 = vunpack.c.l.b16 %v1912
  %v2206 = vunpack.c.h.b16 %v1912
  %v2207 = vunpack.c.l.b16 %v1913
  %v2208 = vunpack.c.h.b16 %v1913
  %v2209 = vunpack.c.l.b16 %v1914
  %v2210 = vunpack.c.h.b16 %v1914
  %v2211 = vunpack.c.l.b16 %v1915
  %v2212 = vunpack.c.h.b16 %v1915
  %v2213 = vunpack.c.l.b16 %v1916
  %v2214 = vunpack.c.h.b16 %v1916
  %v2215 = vunpack.c.l.b16 %v1917
  %v2216 = vunpack.c.h.b16 %v1917
  %v2217 = vunpack.c.l.b16 %v1918
  %v2218 = vunpack.c.h.b16 %v1918
  %v2219 = vunpack.c.l.b16 %v1919
  %v2220 = vunpack.c.h.b16 %v1919
  %v2221 = vunpack.c.l.b16 %v1920
  %v2222 = vunpack.c.h.b16 %v1920
  %v2223 = vunpack.c.l.b16 %v1921
  %v2224 = vunpack.c.h.b16 %v1921
  %v2225 = vunpack.c.l.b16 %v1922
  %v2226 = vunpack.c.h.b16 %v1922
  %v2227 = vunpack.c.l.b16 %v1923
  %v2228 = vunpack.c.h.b16 %v1923
  %v2229 = vunpack.c.l.b16 %v1924
  %v2230 = vunpack.c.h.b16 %v1924
  %v2231 = vunpack.c.l.b16 %v1925
  %v2232 = vunpack.c.h.b16 %v1925
  %v2233 = vunpack.c.l.b16 %v1926
  %v2234 = vunpack.c.h.b16 %v1926
  %v2235 = vunpack.c.l.b16 %v1927
  %v2236 = vunpack.c.h.b16 %v1927
  %v2237 = vunpack.c.l.b16 %v1928
  %v2238 = vunpack.c.h.b16 %v1928
  %v2239 = vunpack.c.l.b16 %v1929
  %v2240 = vunpack.c.h.b16 %v1929
  %v2241 = vunpack.c.l.b16 %v1930
  %v2242 = vunpack.c.h.b16 %v1930
  %v2243 = vunpack.c.l.b16 %v1931
  %v2244 = vunpack.c.h.b16 %v1931
  %v2245 = vunpack.c.l.b16 %v1932
  %v2246 = vunpack.c.h.b16 %v1932
  %v2247 = vunpack.c.l.b16 %v1933
  %v2248 = vunpack.c.h.b16 %v1933
  %v2249 = vunpack.c.l.b16 %v1934
  %v2250 = vunpack.c.h.b16 %v1934
  %v2251 = vunpack.c.l.b16 %v1935
  %v2252 = vunpack.c.h.b16 %v1935
  %v2253 = vunpack.c.l.b16 %v1936
  %v2254 = vunpack.c.h.b16 %v1936
  %v2255 = vunpack.c.l.b16 %v1937
  %v2256 = vunpack.c.h.b16 %v1937
  %v2257 = vunpack.c.l.b16 %v1938
  %v2258 = vunpack.c.h.b16 %v1938
  %v2259 = vunpack.c.l.b16 %v1939
  %v2260 = vunpack.c.h.b16 %v1939
  %v2261 = vunpack.c.l.b16 %v1940
  %v2262 = vunpack.c.h.b16 %v1940
  %v2263 = vunpack.c.l.b16 %v1941
  %v2264 = vunpack.c.h.b16 %v1941
  %v2265 = vunpack.c.l.b16 %v1942
  %v2266 = vunpack.c.h.b16 %v1942
  %v2267 = vunpack.c.l.b16 %v1943
  %v2268 = vunpack.c.h.b16 %v1943
  %v2269 = vunpack.c.l.b16 %v1944
  %v2270 = vunpack.c.h.b16 %v1944
  %v2271 = vunpack.c.l.b16 %v1945
  %v2272 = vunpack.c.h.b16 %v1945
  %v2273 = vunpack.c.l.b16 %v1946
  %v2274 = vunpack.c.h.b16 %v1946
  %v2275 = vunpack.c.l.b16 %v1947
  %v2276 = vunpack.c.h.b16 %v1947
  %v2277 = vunpack.c.l.b16 %v1948
  %v2278 = vunpack.c.h.b16 %v1948
  %v2279 = vunpack.c.l.b16 %v1949
  %v2280 = vunpack.c.h.b16 %v1949
  %v2281 = vunpack.c.l.b16 %v1950
  %v2282 = vunpack.c.h.b16 %v1950
  %v2283 = vunpack.c.l.b16 %v1951
  %v2284 = vunpack.c.h.b16 %v1951
  %v2285 = vunpack.c.l.b16 %v1952
  %v2286 = vunpack.c.h.b16 %v1952
  %v2287 = vunpack.c.l.b16 %v1953
  %v2288 = vunpack.c.h.b16 %v1953
  %v2289 = vunpack.c.l.b16 %v1954
  %v2290 = vunpack.c.h.b16 %v1954
  %v2291 = vunpack.c.l.b16 %v1955
  %v2292 = vunpack.c.h.b16 %v1955
  %v2293 = vunpack.c.l.b16 %v1956
  %v2294 = vunpack.c.h.b16 %v1956
  %v2295 = vunpack.c.l.b16 %v1957
  %v2296 = vunpack.c.h.b16 %v1957
  %v2297 = vunpack.c.l.b16 %v1958
  %v2298 = vunpack.c.h.b16 %v1958
  %v2299 = vunpack.c.l.b16 %v1959
  %v2300 = vunpack.c.h.b16 %v1959
  %v2301 = vunpack.c.l.b16 %v1960
  %v2302 = vunpack.c.h.b16 %v1960
  %v2303 = vunpack.c.l.b16 %v1961
  %v2304 = vunpack.c.h.b16 %v1961
  %v2305 = vunpack.c.l.b16 %v1962
  %v2306 = vunpack.c.h.b16 %v1962
  %v2307 = vunpack.c.l.b16 %v1963
  %v2308 = vunpack.c.h.b16 %v1963
  %v2309 = vunpack.c.l.b16 %v1964
  %v2310 = vunpack.c.h.b16 %v1964
  %v2311 = vunpack.c.l.b16 %v1965
  %v2312 = vunpack.c.h.b16 %v1965
  %v2313 = vunpack.c.l.b16 %v1966
  %v2314 = vunpack.c.h.b16 %v1966
  %v2315 = vunpack.c.l.b16 %v1967
  %v2316 = vunpack.c.h.b16 %v1967
  %v2317 = vunpack.c.l.b16 %v1968
  %v2318 = vunpack.c.h.b16 %v1968
  %v2319 = vunpack.c.l.b16 %v1969
  %v2320 = vunpack.c.h.b16 %v1969
  %v2321 = vunpack.c.l.b16 %v1970
  %v2322 = vunpack.c.h.b16 %v1970
  %v2323 = vunpack.c.l.b16 %v1971
  %v2324 = vunpack.c.h.b16 %v1971
  %v2325 = vunpack.c.l.b16 %v1972
  %v2326 = vunpack.c.h.b16 %v1972
  %v2327 = vunpack.c.l.b16 %v1973
  %v2328 = vunpack.c.h.b16 %v1973
  %v2329 = vunpack.c.l.b16 %v1974
  %v2330 = vunpack.c.h.b16 %v1974
  %v2331 = vunpack.c.l.b16 %v1975
  %v2332 = vunpack.c.h.b16 %v1975
  %v2333 = vunpack.c.l.b16 %v1976
  %v2334 = vunpack.c.h.b16 %v1976
  %v2335 = vunpack.c.l.b16 %v1977
  %v2336 = vunpack.c.h.b16 %v1977
  %v2337 = vunpack.c.l.b16 %v1978
  %v2338 = vunpack.c.h.b16 %v1978
  %v2339 = vunpack.c.l.b16 %v1979
  %v2340 = vunpack.c.h.b16 %v1979
  %v2341 = vunpack.c.l.b16 %v1980
  %v2342 = vunpack.c.h.b16 %v1980
  %v2343 = vunpack.c.l.b16 %v1981
  %v2344 = vunpack.c.h.b16 %v1981
  %v2345 = vunpack.c.l.b16 %v1982
  %v2346 = vunpack.c.h.b16 %v1982
  %v2347 = vunpack.c.l.b16 %v1983
  %v2348 = vunpack.c.h.b16 %v1983
  %v2349 = vunpack.c.l.b16 %v1984
  %v2350 = vunpack.c.h.b16 %v1984
  %v2351 = vunpack.c.l.b16 %v1985
  %v2352 = vunpack.c.h.b16 %v1985
  %v2353 = vunpack.c.l.b16 %v1986
  %v2354 = vunpack.c.h.b16 %v1986
  %v2355 = vunpack.c.l.b16 %v1987
  %v2356 = vunpack.c.h.b16 %v1987
  %v2357 = vunpack.c.l.b16 %v1988
  %v2358 = vunpack.c.h.b16 %v1988
  %v2359 = vunpack.c.l.b16 %v1989
  %v2360 = vunpack.c.h.b16 %v1989
  %v2361 = vunpack.c.l.b16 %v1990
  %v2362 = vunpack.c.h.b16 %v1990
  %v2363 = vunpack.c.l.b16 %v1991
  %v2364 = vunpack.c.h.b16 %v1991
  %v2365 = vunpack.c.l.b16 %v1992
  %v2366 = vunpack.c.h.b16 %v1992
  %v2367 = vunpack.c.l.b16 %v1993
  %v2368 = vunpack.c.h.b16 %v1993
  %v2369 = vunpack.c.l.b16 %v1994
  %v2370 = vunpack.c.h.b16 %v1994
  %v2371 = vunpack.c.l.b16 %v1995
  %v2372 = vunpack.c.h.b16 %v1995
  %v2373 = vunpack.c.l.b16 %v1996
  %v2374 = vunpack.c.h.b16 %v1996
  %v2375 = vunpack.c.l.b16 %v1997
  %v2376 = vunpack.c.h.b16 %v1997
  %v2377 = vunpack.c.l.b16 %v1998
  %v2378 = vunpack.c.h.b16 %v1998
  %v2379 = vunpack.c.l.b16 %v1999
  %v2380 = vunpack.c.h.b16 %v1999
  %v2381 = vunpack.c.l.b16 %v2000
  %v2382 = vunpack.c.h.b16 %v2000
  %v2383 = vunpack.c.l.b16 %v2001
  %v2384 = vunpack.c.h.b16 %v2001
  %v2385 = vunpack.c.l.b16 %v2002
  %v2386 = vunpack.c.h.b16 %v2002
  %v2387 = vunpack.c.l.b16 %v2003
  %v2388 = vunpack.c.h.b16 %v2003
  %v2389 = vunpack.c.l.b16 %v2004
  %v2390 = vunpack.c.h.b16 %v2004
  %v2391 = vunpack.c.l.b16 %v2005
  %v2392 = vunpack.c.h.b16 %v2005
  %v2393 = vunpack.c.l.b16 %v2006
  %v2394 = vunpack.c.h.b16 %v2006
  %v2395 = vunpack.c.l.b16 %v2007
  %v2396 = vunpack.c.h.b16 %v2007
  %v2397 = vunpack.c.l.b16 %v2008
  %v2398 = vunpack.c.h.b16 %v2008
  %v2399 = vunpack.c.l.b16 %v2009
  %v2400 = vunpack.c.h.b16 %v2009
  %v2401 = vunpack.c.l.b16 %v2010
  %v2402 = vunpack.c.h.b16 %v2010
  %v2403 = vunpack.c.l.b16 %v2011
  %v2404 = vunpack.c.h.b16 %v2011
  %v2405 = vunpack.c.l.b16 %v2012
  %v2406 = vunpack.c.h.b16 %v2012
  %v2407 = vunpack.c.l.b16 %v2013
  %v2408 = vunpack.c.h.b16 %v2013
  %v2409 = vunpack.c.l.b16 %v2014
  %v2410 = vunpack.c.h.b16 %v2014
  %v2411 = vunpack.c.l.b16 %v2015
  %v2412 = vunpack.c.h.b16 %v2015
  %v2413 = vunpack.c.l.b16 %v2016
  %v2414 = vunpack.c.h.b16 %v2016
  %v2415 = vunpack.c.l.b16 %v2017
  %v2416 = vunpack.c.h.b16 %v2017
  %v2417 = vunpack.c.l.b16 %v2018
  %v2418 = vunpack.c.h.b16 %v2018
  %v2419 = vunpack.c.l.b16 %v2019
  %v2420 = vunpack.c.h.b16 %v2019
  %v2421 = vunpack.c.l.b16 %v2020
  %v2422 = vunpack.c.h.b16 %v2020
  %v2423 = vpack.c.b16 %v2175, %v2167
  %v2424 = vpack.c.b16 %v2176, %v2168
  %v2425 = vpack.c.b16 %v2177, %v2169
  %v2426 = vpack.c.b16 %v2178, %v2170
  %v2427 = vpack.c.b16 %v2179, %v2171
  %v2428 = vpack.c.b16 %v2180, %v2172
  %v2429 = vpack.c.b16 %v2181, %v2173
  %v2430 = vpack.c.b16 %v2182, %v2174
  %v2431 = vpack.c.b16 %v2191, %v2183
  %v2432 = vpack.c.b16 %v2192, %v2184
  %v2433 = vpack.c.b16 %v2193, %v2185
  %v2434 = vpack.c.b16 %v2194, %v2186
  %v2435 = vpack.c.b16 %v2195, %v2187
  %v2436 = vpack.c.b16 %v2196, %v2188
  %v2437 = vpack.c.b16 %v2197, %v2189
  %v2438 = vpack.c.b16 %v2198, %v2190
  %v2439 = vpack.c.b16 %v2207, %v2199
  %v2440 = vpack.c.b16 %v2208, %v2200
  %v2441 = vpack.c.b16 %v2209, %v2201
  %v2442 = vpack.c.b16 %v2210, %v2202
  %v2443 = vpack.c.b16 %v2211, %v2203
  %v2444 = vpack.c.b16 %v2212, %v2204
  %v2445 = vpack.c.b16 %v2213, %v2205
  %v2446 = vpack.c.b16 %v2214, %v2206
  %v2447 = vpack.c.b16 %v2223, %v2215
  %v2448 = vpack.c.b16 %v2224, %v2216
  %v2449 = vpack.c.b16 %v2225, %v2217
  %v2450 = vpack.c.b16 %v2226, %v2218
  %v2451 = vpack.c.b16 %v2227, %v2219
  %v2452 = vpack.c.b16 %v2228, %v2220
  %v2453 = vpack.c.b16 %v2229, %v2221
  %v2454 = vpack.c.b16 %v2230, %v2222
  %v2455 = vpack.c.b16 %v2239, %v2231
  %v2456 = vpack.c.b16 %v2240, %v2232
  %v2457 = vpack.c.b16 %v2241, %v2233
  %v2458 = vpack.c.b16 %v2242, %v2234
  %v2459 = vpack.c.b16 %v2243, %v2235
  %v2460 = vpack.c.b16 %v2244, %v2236
  %v2461 = vpack.c.b16 %v2245, %v2237
  %v2462 = vpack.c.b16 %v2246, %v2238
  %v2463 = vpack.c.b16 %v2255, %v2247
  %v2464 = vpack.c.b16 %v2256, %v2248
  %v2465 = vpack.c.b16 %v2257, %v2249
  %v2466 = vpack.c.b16 %v2258, %v2250
  %v2467 = vpack.c.b16 %v2259, %v2251
  %v2468 = vpack.c.b16 %v2260, %v2252
  %v2469 = vpack.c.b16 %v2261, %v2253
  %v2470 = vpack.c.b16 %v2262, %v2254
  %v2471 = vpack.c.b16 %v2271, %v2263
  %v2472 = vpack.c.b16 %v2272, %v2264
  %v2473 = vpack.c.b16 %v2273, %v2265
  %v2474 = vpack.c.b16 %v2274, %v2266
  %v2475 = vpack.c.b16 %v2275, %v2267
  %v2476 = vpack.c.b16 %v2276, %v2268
  %v2477 = vpack.c.b16 %v2277, %v2269
  %v2478 = vpack.c.b16 %v2278, %v2270
  %v2479 = vpack.c.b16 %v2287, %v2279
  %v2480 = vpack.c.b16 %v2288, %v2280
  %v2481 = vpack.c.b16 %v2289, %v2281
  %v2482 = vpack.c.b16 %v2290, %v2282
  %v2483 = vpack.c.b16 %v2291, %v2283
  %v2484 = vpack.c.b16 %v2292, %v2284
  %v2485 = vpack.c.b16 %v2293, %v2285
  %v2486 = vpack.c.b16 %v2294, %v2286
  %v2487 = vpack.c.b16 %v2303, %v2295
  %v2488 = vpack.c.b16 %v2304, %v2296
  %v2489 = vpack.c.b16 %v2305, %v2297
  %v2490 = vpack.c.b16 %v2306, %v2298
  %v2491 = vpack.c.b16 %v2307, %v2299
  %v2492 = vpack.c.b16 %v2308, %v2300
  %v2493 = vpack.c.b16 %v2309, %v2301
  %v2494 = vpack.c.b16 %v2310, %v2302
  %v2495 = vpack.c.b16 %v2319, %v2311
  %v2496 = vpack.c.b16 %v2320, %v2312
  %v2497 = vpack.c.b16 %v2321, %v2313
  %v2498 = vpack.c.b16 %v2322, %v2314
  %v2499 = vpack.c.b16 %v2323, %v2315
  %v2500 = vpack.c.b16 %v2324, %v2316
  %v2501 = vpack.c.b16 %v2325, %v2317
  %v2502 = vpack.c.b16 %v2326, %v2318
  %v2503 = vpack.c.b16 %v2335, %v2327
  %v2504 = vpack.c.b16 %v2336, %v2328
  %v2505 = vpack.c.b16 %v2337, %v2329
  %v2506 = vpack.c.b16 %v2338, %v2330
  %v2507 = vpack.c.b16 %v2339, %v2331
  %v2508 = vpack.c.b16 %v2340, %v2332
  %v2509 = vpack.c.b16 %v2341, %v2333
  %v2510 = vpack.c.b16 %v2342, %v2334
  %v2511 = vpack.c.b16 %v2351, %v2343
  %v2512 = vpack.c.b16 %v2352, %v2344
  %v2513 = vpack.c.b16 %v2353, %v2345
  %v2514 = vpack.c.b16 %v2354, %v2346
  %v2515 = vpack.c.b16 %v2355, %v2347
  %v2516 = vpack.c.b16 %v2356, %v2348
  %v2517 = vpack.c.b16 %v2357, %v2349
  %v2518 = vpack.c.b16 %v2358, %v2350
  %v2519 = vpack.c.b16 %v2367, %v2359
  %v2520 = vpack.c.b16 %v2368, %v2360
  %v2521 = vpack.c.b16 %v2369, %v2361
  %v2522 = vpack.c.b16 %v2370, %v2362
  %v2523 = vpack.c.b16 %v2371, %v2363
  %v2524 = vpack.c.b16 %v2372, %v2364
  %v2525 = vpack.c.b16 %v2373, %v2365
  %v2526 = vpack.c.b16 %v2374, %v2366
  %v2527 = vpack.c.b16 %v2383, %v2375
  %v2528 = vpack.c.b16 %v2384, %v2376
  %v2529 = vpack.c.b16 %v2385, %v2377
  %v2530 = vpack.c.b16 %v2386, %v2378
  %v2531 = vpack.c.b16 %v2387, %v2379
  %v2532 = vpack.c.b16 %v2388, %v2380
  %v2533 = vpack.c.b16 %v2389, %v2381
  %v2534 = vpack.c.b16 %v2390, %v2382
  %v2535 = vpack.c.b16 %v2399, %v2391
  %v2536 = vpack.c.b16 %v2400, %v2392
  %v2537 = vpack.c.b16 %v2401, %v2393
  %v2538 = vpack.c.b16 %v2402, %v2394
  %v2539 = vpack.c.b16 %v2403, %v2395
  %v2540 = vpack.c.b16 %v2404, %v2396
  %v2541 = vpack.c.b16 %v2405, %v2397
  %v2542 = vpack.c.b16 %v2406, %v2398
  %v2543 = vpack.c.b16 %v2415, %v2407
  %v2544 = vpack.c.b16 %v2416, %v2408
  %v2545 = vpack.c.b16 %v2417, %v2409
  %v2546 = vpack.c.b16 %v2418, %v2410
  %v2547 = vpack.c.b16 %v2419, %v2411
  %v2548 = vpack.c.b16 %v2420, %v2412
  %v2549 = vpack.c.b16 %v2421, %v2413
  %v2550 = vpack.c.b16 %v2422, %v2414
  %2679 = vmatpush.bf16.msra.mxu0 %v2479
  %2680 = vmatpush.bf16.msra.mxu0 %v2471
  %2681 = vmatpush.bf16.msra.mxu0 %v2463
  %2682 = vmatpush.bf16.msra.mxu0 %v2455
  %2683 = vmatpush.bf16.msra.mxu0 %v2447
  %2684 = vmatpush.bf16.msra.mxu0 %v2439
  %2685 = vmatpush.bf16.msra.mxu0 %v2431
  %2686 = vmatpush.bf16.msra.mxu0 %v2423
  %2687 = vmatmul.bf16.gmra.mxu0 %v1891
  %v2688 = vpop.f32.mrf.mxu0
  %v2689 = vadd.f32 %v2023, %v2688
  %v2690 = vpop.f32.mrf.mxu0
  %v2691 = vadd.f32 %v2023, %v2690
  %2692 = vdwg.mxu0
  %2693 = vmatpush.bf16.msra.mxu0 %v2543
  %2694 = vmatpush.bf16.msra.mxu0 %v2535
  %2695 = vmatpush.bf16.msra.mxu0 %v2527
  %2696 = vmatpush.bf16.msra.mxu0 %v2519
  %2697 = vmatpush.bf16.msra.mxu0 %v2511
  %2698 = vmatpush.bf16.msra.mxu0 %v2503
  %2699 = vmatpush.bf16.msra.mxu0 %v2495
  %2700 = vmatpush.bf16.msra.mxu0 %v2487
  %2701 = vmatmul.bf16.gmra.mxu0 %v1892
  %v2702 = vpop.f32.mrf.mxu0
  %v2703 = vadd.f32 %v2689, %v2702
  %v2704 = vpop.f32.mrf.mxu0
  %v2705 = vadd.f32 %v2691, %v2704
  %2706 = vdwg.mxu0
  %2707 = vmatpush.bf16.msra.mxu0 %v2480
  %2708 = vmatpush.bf16.msra.mxu0 %v2472
  %2709 = vmatpush.bf16.msra.mxu0 %v2464
  %2710 = vmatpush.bf16.msra.mxu0 %v2456
  %2711 = vmatpush.bf16.msra.mxu0 %v2448
  %2712 = vmatpush.bf16.msra.mxu0 %v2440
  %2713 = vmatpush.bf16.msra.mxu0 %v2432
  %2714 = vmatpush.bf16.msra.mxu0 %v2424
  %2715 = vmatmul.bf16.gmra.mxu0 %v1891
  %v2716 = vpop.f32.mrf.mxu0
  %v2717 = vadd.f32 %v2024, %v2716
  %v2718 = vpop.f32.mrf.mxu0
  %v2719 = vadd.f32 %v2024, %v2718
  %2720 = vdwg.mxu0
  %2721 = vmatpush.bf16.msra.mxu0 %v2544
  %2722 = vmatpush.bf16.msra.mxu0 %v2536
  %2723 = vmatpush.bf16.msra.mxu0 %v2528
  %2724 = vmatpush.bf16.msra.mxu0 %v2520
  %2725 = vmatpush.bf16.msra.mxu0 %v2512
  %2726 = vmatpush.bf16.msra.mxu0 %v2504
  %2727 = vmatpush.bf16.msra.mxu0 %v2496
  %2728 = vmatpush.bf16.msra.mxu0 %v2488
  %2729 = vmatmul.bf16.gmra.mxu0 %v1892
  %v2730 = vpop.f32.mrf.mxu0
  %v2731 = vadd.f32 %v2717, %v2730
  %v2732 = vpop.f32.mrf.mxu0
  %v2733 = vadd.f32 %v2719, %v2732
  %2734 = vdwg.mxu0
  %2735 = vmatpush.bf16.msra.mxu0 %v2481
  %2736 = vmatpush.bf16.msra.mxu0 %v2473
  %2737 = vmatpush.bf16.msra.mxu0 %v2465
  %2738 = vmatpush.bf16.msra.mxu0 %v2457
  %2739 = vmatpush.bf16.msra.mxu0 %v2449
  %2740 = vmatpush.bf16.msra.mxu0 %v2441
  %2741 = vmatpush.bf16.msra.mxu0 %v2433
  %2742 = vmatpush.bf16.msra.mxu0 %v2425
  %2743 = vmatmul.bf16.gmra.mxu0 %v1891
  %v2744 = vpop.f32.mrf.mxu0
  %v2745 = vadd.f32 %v2025, %v2744
  %v2746 = vpop.f32.mrf.mxu0
  %v2747 = vadd.f32 %v2025, %v2746
  %2748 = vdwg.mxu0
  %2749 = vmatpush.bf16.msra.mxu0 %v2545
  %2750 = vmatpush.bf16.msra.mxu0 %v2537
  %2751 = vmatpush.bf16.msra.mxu0 %v2529
  %2752 = vmatpush.bf16.msra.mxu0 %v2521
  %2753 = vmatpush.bf16.msra.mxu0 %v2513
  %2754 = vmatpush.bf16.msra.mxu0 %v2505
  %2755 = vmatpush.bf16.msra.mxu0 %v2497
  %2756 = vmatpush.bf16.msra.mxu0 %v2489
  %2757 = vmatmul.bf16.gmra.mxu0 %v1892
  %v2758 = vpop.f32.mrf.mxu0
  %v2759 = vadd.f32 %v2745, %v2758
  %v2760 = vpop.f32.mrf.mxu0
  %v2761 = vadd.f32 %v2747, %v2760
  %2762 = vdwg.mxu0
  %2763 = vmatpush.bf16.msra.mxu0 %v2482
  %2764 = vmatpush.bf16.msra.mxu0 %v2474
  %2765 = vmatpush.bf16.msra.mxu0 %v2466
  %2766 = vmatpush.bf16.msra.mxu0 %v2458
  %2767 = vmatpush.bf16.msra.mxu0 %v2450
  %2768 = vmatpush.bf16.msra.mxu0 %v2442
  %2769 = vmatpush.bf16.msra.mxu0 %v2434
  %2770 = vmatpush.bf16.msra.mxu0 %v2426
  %2771 = vmatmul.bf16.gmra.mxu0 %v1891
  %v2772 = vpop.f32.mrf.mxu0
  %v2773 = vadd.f32 %v2026, %v2772
  %v2774 = vpop.f32.mrf.mxu0
  %v2775 = vadd.f32 %v2026, %v2774
  %2776 = vdwg.mxu0
  %2777 = vmatpush.bf16.msra.mxu0 %v2546
  %2778 = vmatpush.bf16.msra.mxu0 %v2538
  %2779 = vmatpush.bf16.msra.mxu0 %v2530
  %2780 = vmatpush.bf16.msra.mxu0 %v2522
  %2781 = vmatpush.bf16.msra.mxu0 %v2514
  %2782 = vmatpush.bf16.msra.mxu0 %v2506
  %2783 = vmatpush.bf16.msra.mxu0 %v2498
  %2784 = vmatpush.bf16.msra.mxu0 %v2490
  %2785 = vmatmul.bf16.gmra.mxu0 %v1892
  %v2786 = vpop.f32.mrf.mxu0
  %v2787 = vadd.f32 %v2773, %v2786
  %v2788 = vpop.f32.mrf.mxu0
  %v2789 = vadd.f32 %v2775, %v2788
  %2790 = vdwg.mxu0
  %2791 = vmatpush.bf16.msra.mxu0 %v2483
  %2792 = vmatpush.bf16.msra.mxu0 %v2475
  %2793 = vmatpush.bf16.msra.mxu0 %v2467
  %2794 = vmatpush.bf16.msra.mxu0 %v2459
  %2795 = vmatpush.bf16.msra.mxu0 %v2451
  %2796 = vmatpush.bf16.msra.mxu0 %v2443
  %2797 = vmatpush.bf16.msra.mxu0 %v2435
  %2798 = vmatpush.bf16.msra.mxu0 %v2427
  %2799 = vmatmul.bf16.gmra.mxu0 %v1891
  %v2800 = vpop.f32.mrf.mxu0
  %v2801 = vadd.f32 %v2027, %v2800
  %v2802 = vpop.f32.mrf.mxu0
  %v2803 = vadd.f32 %v2027, %v2802
  %2804 = vdwg.mxu0
  %2805 = vmatpush.bf16.msra.mxu0 %v2547
  %2806 = vmatpush.bf16.msra.mxu0 %v2539
  %2807 = vmatpush.bf16.msra.mxu0 %v2531
  %2808 = vmatpush.bf16.msra.mxu0 %v2523
  %2809 = vmatpush.bf16.msra.mxu0 %v2515
  %2810 = vmatpush.bf16.msra.mxu0 %v2507
  %2811 = vmatpush.bf16.msra.mxu0 %v2499
  %2812 = vmatpush.bf16.msra.mxu0 %v2491
  %2813 = vmatmul.bf16.gmra.mxu0 %v1892
  %v2814 = vpop.f32.mrf.mxu0
  %v2815 = vadd.f32 %v2801, %v2814
  %v2816 = vpop.f32.mrf.mxu0
  %v2817 = vadd.f32 %v2803, %v2816
  %2818 = vdwg.mxu0
  %2819 = vmatpush.bf16.msra.mxu0 %v2484
  %2820 = vmatpush.bf16.msra.mxu0 %v2476
  %2821 = vmatpush.bf16.msra.mxu0 %v2468
  %2822 = vmatpush.bf16.msra.mxu0 %v2460
  %2823 = vmatpush.bf16.msra.mxu0 %v2452
  %2824 = vmatpush.bf16.msra.mxu0 %v2444
  %2825 = vmatpush.bf16.msra.mxu0 %v2436
  %2826 = vmatpush.bf16.msra.mxu0 %v2428
  %2827 = vmatmul.bf16.gmra.mxu0 %v1891
  %v2828 = vpop.f32.mrf.mxu0
  %v2829 = vadd.f32 %v2028, %v2828
  %v2830 = vpop.f32.mrf.mxu0
  %v2831 = vadd.f32 %v2028, %v2830
  %2832 = vdwg.mxu0
  %2833 = vmatpush.bf16.msra.mxu0 %v2548
  %2834 = vmatpush.bf16.msra.mxu0 %v2540
  %2835 = vmatpush.bf16.msra.mxu0 %v2532
  %2836 = vmatpush.bf16.msra.mxu0 %v2524
  %2837 = vmatpush.bf16.msra.mxu0 %v2516
  %2838 = vmatpush.bf16.msra.mxu0 %v2508
  %2839 = vmatpush.bf16.msra.mxu0 %v2500
  %2840 = vmatpush.bf16.msra.mxu0 %v2492
  %2841 = vmatmul.bf16.gmra.mxu0 %v1892
  %v2842 = vpop.f32.mrf.mxu0
  %v2843 = vadd.f32 %v2829, %v2842
  %v2844 = vpop.f32.mrf.mxu0
  %v2845 = vadd.f32 %v2831, %v2844
  %2846 = vdwg.mxu0
  %2847 = vmatpush.bf16.msra.mxu0 %v2485
  %2848 = vmatpush.bf16.msra.mxu0 %v2477
  %2849 = vmatpush.bf16.msra.mxu0 %v2469
  %2850 = vmatpush.bf16.msra.mxu0 %v2461
  %2851 = vmatpush.bf16.msra.mxu0 %v2453
  %2852 = vmatpush.bf16.msra.mxu0 %v2445
  %2853 = vmatpush.bf16.msra.mxu0 %v2437
  %2854 = vmatpush.bf16.msra.mxu0 %v2429
  %2855 = vmatmul.bf16.gmra.mxu0 %v1891
  %v2856 = vpop.f32.mrf.mxu0
  %v2857 = vadd.f32 %v2029, %v2856
  %v2858 = vpop.f32.mrf.mxu0
  %v2859 = vadd.f32 %v2029, %v2858
  %2860 = vdwg.mxu0
  %2861 = vmatpush.bf16.msra.mxu0 %v2549
  %2862 = vmatpush.bf16.msra.mxu0 %v2541
  %2863 = vmatpush.bf16.msra.mxu0 %v2533
  %2864 = vmatpush.bf16.msra.mxu0 %v2525
  %2865 = vmatpush.bf16.msra.mxu0 %v2517
  %2866 = vmatpush.bf16.msra.mxu0 %v2509
  %2867 = vmatpush.bf16.msra.mxu0 %v2501
  %2868 = vmatpush.bf16.msra.mxu0 %v2493
  %2869 = vmatmul.bf16.gmra.mxu0 %v1892
  %v2870 = vpop.f32.mrf.mxu0
  %v2871 = vadd.f32 %v2857, %v2870
  %v2872 = vpop.f32.mrf.mxu0
  %v2873 = vadd.f32 %v2859, %v2872
  %2874 = vdwg.mxu0
  %2875 = vmatpush.bf16.msra.mxu0 %v2486
  %2876 = vmatpush.bf16.msra.mxu0 %v2478
  %2877 = vmatpush.bf16.msra.mxu0 %v2470
  %2878 = vmatpush.bf16.msra.mxu0 %v2462
  %2879 = vmatpush.bf16.msra.mxu0 %v2454
  %2880 = vmatpush.bf16.msra.mxu0 %v2446
  %2881 = vmatpush.bf16.msra.mxu0 %v2438
  %2882 = vmatpush.bf16.msra.mxu0 %v2430
  %2883 = vmatmul.bf16.gmra.mxu0 %v1891
  %v2884 = vpop.f32.mrf.mxu0
  %v2885 = vadd.f32 %v2030, %v2884
  %v2886 = vpop.f32.mrf.mxu0
  %v2887 = vadd.f32 %v2030, %v2886
  %2888 = vdwg.mxu0
  %2889 = vmatpush.bf16.msra.mxu0 %v2550
  %2890 = vmatpush.bf16.msra.mxu0 %v2542
  %2891 = vmatpush.bf16.msra.mxu0 %v2534
  %2892 = vmatpush.bf16.msra.mxu0 %v2526
  %2893 = vmatpush.bf16.msra.mxu0 %v2518
  %2894 = vmatpush.bf16.msra.mxu0 %v2510
  %2895 = vmatpush.bf16.msra.mxu0 %v2502
  %2896 = vmatpush.bf16.msra.mxu0 %v2494
  %2897 = vmatmul.bf16.gmra.mxu0 %v1892
  %v2898 = vpop.f32.mrf.mxu0
  %v2899 = vadd.f32 %v2885, %v2898
  %v2900 = vpop.f32.mrf.mxu0
  %v2901 = vadd.f32 %v2887, %v2900
  %2902 = vdwg.mxu0
  %v2903 = vsub.f32 0.0, %v2703
  %v2904 = vsub.f32 0.0, %v2731
  %v2905 = vsub.f32 0.0, %v2759
  %v2906 = vsub.f32 0.0, %v2787
  %v2907 = vsub.f32 0.0, %v2815
  %v2908 = vsub.f32 0.0, %v2843
  %v2909 = vsub.f32 0.0, %v2871
  %v2910 = vsub.f32 0.0, %v2899
  %v2911 = vsub.f32 0.0, %v2705
  %v2912 = vsub.f32 0.0, %v2733
  %v2913 = vsub.f32 0.0, %v2761
  %v2914 = vsub.f32 0.0, %v2789
  %v2915 = vsub.f32 0.0, %v2817
  %v2916 = vsub.f32 0.0, %v2845
  %v2917 = vsub.f32 0.0, %v2873
  %v2918 = vsub.f32 0.0, %v2901
  %v2919 = vmul.f32 %v2903, 1.442695
  %v2920 = vpow.pop %v2919
  %v2921 = vmul.f32 %v2904, 1.442695
  %v2922 = vpow.pop %v2921
  %v2923 = vmul.f32 %v2905, 1.442695
  %v2924 = vpow.pop %v2923
  %v2925 = vmul.f32 %v2906, 1.442695
  %v2926 = vpow.pop %v2925
  %v2927 = vmul.f32 %v2907, 1.442695
  %v2928 = vpow.pop %v2927
  %v2929 = vmul.f32 %v2908, 1.442695
  %v2930 = vpow.pop %v2929
  %v2931 = vmul.f32 %v2909, 1.442695
  %v2932 = vpow.pop %v2931
  %v2933 = vmul.f32 %v2910, 1.442695
  %v2934 = vpow.pop %v2933
  %v2935 = vmul.f32 %v2911, 1.442695
  %v2936 = vpow.pop %v2935
  %v2937 = vmul.f32 %v2912, 1.442695
  %v2938 = vpow.pop %v2937
  %v2939 = vmul.f32 %v2913, 1.442695
  %v2940 = vpow.pop %v2939
  %v2941 = vmul.f32 %v2914, 1.442695
  %v2942 = vpow.pop %v2941
  %v2943 = vmul.f32 %v2915, 1.442695
  %v2944 = vpow.pop %v2943
  %v2945 = vmul.f32 %v2916, 1.442695
  %v2946 = vpow.pop %v2945
  %v2947 = vmul.f32 %v2917, 1.442695
  %v2948 = vpow.pop %v2947
  %v2949 = vmul.f32 %v2918, 1.442695
  %v2950 = vpow.pop %v2949
  %v2951 = vadd.f32 %v2920, 1.0
  %v2952 = vadd.f32 %v2922, 1.0
  %v2953 = vadd.f32 %v2924, 1.0
  %v2954 = vadd.f32 %v2926, 1.0
  %v2955 = vadd.f32 %v2928, 1.0
  %v2956 = vadd.f32 %v2930, 1.0
  %v2957 = vadd.f32 %v2932, 1.0
  %v2958 = vadd.f32 %v2934, 1.0
  %v2959 = vadd.f32 %v2936, 1.0
  %v2960 = vadd.f32 %v2938, 1.0
  %v2961 = vadd.f32 %v2940, 1.0
  %v2962 = vadd.f32 %v2942, 1.0
  %v2963 = vadd.f32 %v2944, 1.0
  %v2964 = vadd.f32 %v2946, 1.0
  %v2965 = vadd.f32 %v2948, 1.0
  %v2966 = vadd.f32 %v2950, 1.0
  %v2967 = vrcp.pop %v2951
  %v2968 = vrcp.pop %v2952
  %v2969 = vrcp.pop %v2953
  %v2970 = vrcp.pop %v2954
  %v2971 = vrcp.pop %v2955
  %v2972 = vrcp.pop %v2956
  %v2973 = vrcp.pop %v2957
  %v2974 = vrcp.pop %v2958
  %v2975 = vrcp.pop %v2959
  %v2976 = vrcp.pop %v2960
  %v2977 = vrcp.pop %v2961
  %v2978 = vrcp.pop %v2962
  %v2979 = vrcp.pop %v2963
  %v2980 = vrcp.pop %v2964
  %v2981 = vrcp.pop %v2965
  %v2982 = vrcp.pop %v2966
  %v2983 = vpack.c.bf16 %v2968, %v2967
  %v2984 = vpack.c.bf16 %v2970, %v2969
  %v2985 = vpack.c.bf16 %v2972, %v2971
  %v2986 = vpack.c.bf16 %v2974, %v2973
  %v2987 = vpack.c.bf16 %v2976, %v2975
  %v2988 = vpack.c.bf16 %v2978, %v2977
  %v2989 = vpack.c.bf16 %v2980, %v2979
  %v2990 = vpack.c.bf16 %v2982, %v2981
  %2991 = vst [vmem:[%s11] sm:$0xff] %v2983
  %2992 = vst [vmem:[%s11 + $0x8] sm:$0xff] %v2984
  %2993 = vst [vmem:[%s11 + $0x10] sm:$0xff] %v2985
  %2994 = vst [vmem:[%s11 + $0x18] sm:$0xff] %v2986
  %2995 = vst [vmem:[%s11 + $0x20] sm:$0xff] %v2987
  %2996 = vst [vmem:[%s11 + $0x28] sm:$0xff] %v2988
  %2997 = vst [vmem:[%s11 + $0x30] sm:$0xff] %v2989
  %2998 = vst [vmem:[%s11 + $0x38] sm:$0xff] %v2990
  // Predicated region
  $region42: #{vae_forward.1} parent=0 // pred_check
    _
  $region43: #{vae_forward.1} parent=0 // pred_check_branch
    %3000 = sbr.rel (0) target = $region45
  $region44: #{vae_forward.1} parent=0 // pred_region
    _
  $region45: #{vae_forward.1} parent=0 // pred_fallthru
    _
  // Predicated region
  $region46: #{vae_forward.1} parent=0 // pred_check
    _
  $region47: #{vae_forward.1} parent=0 // pred_check_branch
    %3002 = sbr.rel (0) target = $region49
  $region48: #{vae_forward.1} parent=0 // pred_region
    _
  $region49: #{vae_forward.1} parent=0 // pred_fallthru
    _
  // Predicated region
  $region50: #{vae_forward.1} parent=0 // pred_check
    _
  $region51: #{vae_forward.1} parent=0 // pred_check_branch
    %3004 = sbr.rel (0) target = $region53
  $region52: #{vae_forward.1} parent=0 // pred_region
    _
  $region53: #{vae_forward.1} parent=0 // pred_fallthru
    _
  // Predicated region
  $region54: #{vae_forward.1} parent=0 // pred_check
    _
  $region55: #{vae_forward.1} parent=0 // pred_check_branch
    %3006 = sbr.rel (0) target = $region57
  $region56: #{vae_forward.1} parent=0 // pred_region
    _
  $region57: #{vae_forward.1} parent=0 // pred_fallthru
    _

</llo_original>
